<compile_context>
chip_gen: v6e
topology: v6e:2x2x1
jax: 0.10.0
libtpu: 0.0.40
codegen_flags: <defaults>
</compile_context>

<pallas_src>
import functools

import jax
import jax.numpy as jnp
from jax import lax
from jax.experimental import pallas as pl
from jax.experimental.pallas import tpu as pltpu

EPS = 1e-5  # PyTorch BatchNorm2d default eps


# ---------------------------------------------------------------------------
# Pallas kernel: Bt batch elements per grid step, everything lane-dense.
# ---------------------------------------------------------------------------
def _double_blaze_kernel(xq_ref, dwl_ref, w1_ref, b1_ref, band_ref, wsc_ref,
                         bo_ref, out_ref, hp_ref,
                         *, stride, Ho, Wo, Cin, Cmid, Cout, Bt):
    rows = Bt * Ho

    xq = xq_ref[...].astype(jnp.float32)    # (Bt, stride^2, Hq, Wq*Cin) parity planes
    dwl = dwl_ref[...]                      # (25, Wo*Cin) per-tap depthwise weights

    # --- depthwise 5x5 conv; stride folded into the parity planes -------------
    # 25 shifted MACs on (Wo*Cin)-wide lanes; no strided slices for stride=2.
    acc = jnp.zeros((Bt, Ho, Wo * Cin), jnp.float32)
    for ky in range(5):
        py, qy = ky % stride, ky // stride
        for kx in range(5):
            px, qx = kx % stride, kx // stride
            patch = xq[:, py * stride + px, qy:qy + Ho,
                       qx * Cin:(qx + Wo) * Cin]
            acc = acc + patch * dwl[5 * ky + kx][None, None, :]

    # --- stage 1: 1x1 conv + BN1 + BN2 + ReLU as ONE block-diagonal matmul ----
    h = jnp.dot(acc.reshape(rows, Wo * Cin), w1_ref[...],
                preferred_element_type=jnp.float32) + b1_ref[...]
    h = jnp.maximum(h, 0.0)                                  # (rows, Wo*Cmid)

    # --- zero-pad h (pad=2) into a VMEM scratch for the full 5x5 conv ---------
    hp_ref[...] = jnp.zeros_like(hp_ref)
    hp_ref[:, 2:2 + Ho, 2 * Cmid:(2 + Wo) * Cmid] = h.reshape(Bt, Ho, Wo * Cmid)

    # --- shortcut activations: MaxPool(k=stride) = max over parity planes -----
    off = 2 // stride
    xs = None
    for py in range(stride):
        for px in range(stride):
            v = xq[:, py * stride + px, off:off + Ho,
                   off * Cin:(off + Wo) * Cin]
            xs = v if xs is None else jnp.maximum(xs, v)

    # --- stage 2 (full 5x5 + BN3 + 1x1 + BN4) + shortcut (1x1 + BNsc) ---------
    # fused residual: 5 banded matmuls + 1 block-diag matmul, shared bias, ReLU.
    out = jnp.dot(xs.reshape(rows, Wo * Cin), wsc_ref[...],
                  preferred_element_type=jnp.float32) + bo_ref[...]
    for ky in range(5):
        hrow = hp_ref[:, ky:ky + Ho, :].reshape(rows, (Wo + 4) * Cmid)
        out = out + jnp.dot(hrow, band_ref[ky],
                            preferred_element_type=jnp.float32)
    out = jnp.maximum(out, 0.0)

    # lane-dense store: (Bt, Ho, Wo*Cout) last dim = 128 lanes at demo shapes.
    out_ref[...] = out.reshape(Bt, Ho, Wo * Cout).astype(out_ref.dtype)


# ---------------------------------------------------------------------------
# Wrapper: BN folding, parity-plane / lane-dense repacking, pallas_call.
# ---------------------------------------------------------------------------
def _bn_fold(gamma, beta, mean, var):
    s = gamma / jnp.sqrt(var + EPS)
    return s, beta - mean * s


def double_blaze_block_v2(x_nchw, params, stride=1):
    assert stride in (1, 2)
    B, Cin, H, W = x_nchw.shape
    assert H % stride == 0 and W % stride == 0, \
        "TODO(synk): odd H/W with stride=2 (ceil-div conv output) not supported"
    Cmid = params["pw1_w"].shape[0]
    Cout = params["pw2_w"].shape[0]
    Ho, Wo = H // stride, W // stride
    nplanes = stride * stride
    Hq, Wq = (H + 4) // stride, (W + 4) // stride
    f32 = jnp.float32

    # ---- input: NCHW -> NHWC -> pad 2 -> stride-parity planes, lanes=(W,C) ----
    # pure layout ops; XLA fuses them into one copy when the wrapper is jitted.
    x = jnp.transpose(x_nchw, (0, 2, 3, 1))
    xp = jnp.pad(x, ((0, 0), (2, 2), (2, 2), (0, 0)))
    xq = xp.reshape(B, Hq, stride, Wq, stride, Cin)
    xq = jnp.transpose(xq, (0, 2, 4, 1, 3, 5)).reshape(B, nplanes, Hq, Wq * Cin)

    # ---- fold every BN (+ conv bias) into the matmul weights (free, wrapper) --
    s1, t1 = _bn_fold(params["bn1_g"], params["bn1_b"], params["bn1_m"], params["bn1_v"])
    s2, t2 = _bn_fold(params["bn2_g"], params["bn2_b"], params["bn2_m"], params["bn2_v"])
    s3, t3 = _bn_fold(params["bn3_g"], params["bn3_b"], params["bn3_m"], params["bn3_v"])
    s4, t4 = _bn_fold(params["bn4_g"], params["bn4_b"], params["bn4_m"], params["bn4_v"])
    ssc, tsc = _bn_fold(params["bnsc_g"], params["bnsc_b"], params["bnsc_m"], params["bnsc_v"])

    dw_w = params["dw_w"].astype(f32)                   # (Cin, 1, 5, 5)
    w1 = params["pw1_w"][:, :, 0, 0].T.astype(f32)      # (Cin, Cmid)
    w2 = params["pw2_w"][:, :, 0, 0].T.astype(f32)      # (Cmid, Cout)
    wsc = params["pwsc_w"][:, :, 0, 0].T.astype(f32)    # (Cin, Cout)
    c5 = params["c5_w"].astype(f32)                     # (Cmid, Cmid, 5, 5)

    # stage 1: h = relu(dwconv(x) @ W1f + b1f)
    W1f = (s1[:, None] * w1) * s2[None, :]
    b1f = (params["dw_b"] * s1 + t1) @ w1 * s2 + params["pw1_b"] * s2 + t2

    # stage 2: full5x5 -> BN3 -> 1x1 -> BN4 collapses to one (5,5,Cmid,Cout) map
    A = (s3[:, None] * w2) * s4[None, :]                          # (Cmid, Cout)
    Wt = jnp.einsum("mcyx,mo->yxco", c5, A)                       # (5,5,Cmid,Cout)
    b2f = (params["c5_b"] * s3 + t3) @ w2 * s4 + params["pw2_b"] * s4 + t4

    # shortcut 1x1 + BNsc
    Wscf = wsc * ssc[None, :]
    bscf = params["pwsc_b"] * ssc + tsc

    # ---- pack weights into lane-dense (per output-row) matmul operands --------
    eye = jnp.eye(Wo, dtype=f32)
    w1blk = jnp.kron(eye, W1f)                                    # (Wo*Cin, Wo*Cmid)
    wscblk = jnp.kron(eye, Wscf)                                  # (Wo*Cin, Wo*Cout)
    bands = []
    for ky in range(5):
        band = jnp.zeros(((Wo + 4) * Cmid, Wo * Cout), f32)
        for kx in range(5):
            blk = jnp.kron(eye, Wt[ky, kx])                       # (Wo*Cmid, Wo*Cout)
            band = band + jnp.pad(blk, ((kx * Cmid, (4 - kx) * Cmid), (0, 0)))
        bands.append(band)
    band_w = jnp.stack(bands, axis=0)                             # (5,(Wo+4)*Cmid,Wo*Cout)

    b1t = jnp.tile(b1f, Wo).reshape(1, Wo * Cmid).astype(f32)
    bot = jnp.tile(b2f + bscf, Wo).reshape(1, Wo * Cout).astype(f32)
    dwl = jnp.stack([jnp.tile(dw_w[:, 0, ky, kx], Wo)
                     for ky in range(5) for kx in range(5)], axis=0)  # (25, Wo*Cin)

    # ---- batch tile / grid -----------------------------------------------------
    Bt = next(c for c in (8, 4, 2, 1) if B % c == 0)   # several images per grid step

    kernel = functools.partial(_double_blaze_kernel, stride=stride, Ho=Ho, Wo=Wo,
                               Cin=Cin, Cmid=Cmid, Cout=Cout, Bt=Bt)

    def rep(shape):  # broadcast (grid-invariant) operand
        nd = len(shape)
        return pl.BlockSpec(shape, lambda b, _nd=nd: (0,) * _nd)

    out = pl.pallas_call(
        kernel,
        out_shape=jax.ShapeDtypeStruct((B, Ho, Wo * Cout), f32),
        grid=(B // Bt,),
        in_specs=[
            pl.BlockSpec((Bt, nplanes, Hq, Wq * Cin), lambda b: (b, 0, 0, 0)),
            rep((25, Wo * Cin)),
            rep((Wo * Cin, Wo * Cmid)),
            rep((1, Wo * Cmid)),
            rep((5, (Wo + 4) * Cmid, Wo * Cout)),
            rep((Wo * Cin, Wo * Cout)),
            rep((1, Wo * Cout)),
        ],
        out_specs=pl.BlockSpec((Bt, Ho, Wo * Cout), lambda b: (b, 0, 0)),
        scratch_shapes=[pltpu.VMEM((Bt, Ho + 4, (Wo + 4) * Cmid), f32)],
        compiler_params=pltpu.CompilerParams(
            dimension_semantics=("parallel",),        # batch axis -> both TCs on v7x
            vmem_limit_bytes=32 * 1024 * 1024),       # safe on v5e / v6e / v7x
    )(xq, dwl.astype(f32), w1blk, b1t, band_w, wscblk, bot)

    # lane-dense kernel output -> NCHW
    out = out.reshape(B, Ho, Wo, Cout)
    return jnp.transpose(out, (0, 3, 1, 2))


# ---------------------------------------------------------------------------
# Deterministic synthetic parameters (PyTorch shapes).
# ---------------------------------------------------------------------------
def make_params(key, in_channels, out_channels, mid_channels=None):
    mid = mid_channels or in_channels
    ks = jax.random.split(key, 16)

    def bn(k, c):
        k1, k2, k3, k4 = jax.random.split(k, 4)
        return dict(g=1.0 + 0.1 * jax.random.normal(k1, (c,)),
                    b=0.1 * jax.random.normal(k2, (c,)),
                    m=0.1 * jax.random.normal(k3, (c,)),
                    v=0.5 + jnp.abs(jax.random.normal(k4, (c,))))

    p = {
        "dw_w": 0.2 * jax.random.normal(ks[0], (in_channels, 1, 5, 5)),
        "dw_b": 0.1 * jax.random.normal(ks[1], (in_channels,)),
        "pw1_w": 0.2 * jax.random.normal(ks[2], (mid, in_channels, 1, 1)),
        "pw1_b": 0.1 * jax.random.normal(ks[3], (mid,)),
        "c5_w": 0.2 * jax.random.normal(ks[4], (mid, mid, 5, 5)),
        "c5_b": 0.1 * jax.random.normal(ks[5], (mid,)),
        "pw2_w": 0.2 * jax.random.normal(ks[6], (out_channels, mid, 1, 1)),
        "pw2_b": 0.1 * jax.random.normal(ks[7], (out_channels,)),
        "pwsc_w": 0.2 * jax.random.normal(ks[8], (out_channels, in_channels, 1, 1)),
        "pwsc_b": 0.1 * jax.random.normal(ks[9], (out_channels,)),
    }
    for name, d in (("bn1", bn(ks[10], in_channels)), ("bn2", bn(ks[11], mid)),
                    ("bn3", bn(ks[12], mid)), ("bn4", bn(ks[13], out_channels)),
                    ("bnsc", bn(ks[14], out_channels))):
        for k2, v in d.items():
            p[f"{name}_{k2}"] = v
    return jax.tree.map(lambda a: a.astype(jnp.float32), p)


# ---------------------------------------------------------------------------
# Pure-JAX reference (eval-mode BN), for correctness checking only.
# ---------------------------------------------------------------------------
def reference(x, p, stride):
    dn = ("NCHW", "OIHW", "NCHW")

    def bn(y, g, b, m, v):
        s = g / jnp.sqrt(v + EPS)
        return y * s[None, :, None, None] + (b - m * s)[None, :, None, None]

    y = lax.conv_general_dilated(x, p["dw_w"], (stride, stride), ((2, 2), (2, 2)),
                                 feature_group_count=x.shape[1],
                                 dimension_numbers=dn)
    y = y + p["dw_b"][None, :, None, None]
    y = bn(y, p["bn1_g"], p["bn1_b"], p["bn1_m"], p["bn1_v"])
    y = lax.conv_general_dilated(y, p["pw1_w"], (1, 1), "VALID", dimension_numbers=dn)
    y = y + p["pw1_b"][None, :, None, None]
    y = bn(y, p["bn2_g"], p["bn2_b"], p["bn2_m"], p["bn2_v"])
    y = jnp.maximum(y, 0.0)
    y = lax.conv_general_dilated(y, p["c5_w"], (1, 1), ((2, 2), (2, 2)),
                                 dimension_numbers=dn)
    y = y + p["c5_b"][None, :, None, None]
    y = bn(y, p["bn3_g"], p["bn3_b"], p["bn3_m"], p["bn3_v"])
    y = lax.conv_general_dilated(y, p["pw2_w"], (1, 1), "VALID", dimension_numbers=dn)
    y = y + p["pw2_b"][None, :, None, None]
    y = bn(y, p["bn4_g"], p["bn4_b"], p["bn4_m"], p["bn4_v"])

    if stride == 1:
        s = x
    else:
        s = lax.reduce_window(x, -jnp.inf, lax.max, (1, 1, stride, stride),
                              (1, 1, stride, stride), "VALID")
    s = lax.conv_general_dilated(s, p["pwsc_w"], (1, 1), "VALID", dimension_numbers=dn)
    s = s + p["pwsc_b"][None, :, None, None]
    s = bn(s, p["bnsc_g"], p["bnsc_b"], p["bnsc_m"], p["bnsc_v"])

    return jnp.maximum(y + s, 0.0)


if __name__ == "__main__":
    B, Cin, Cout, H, W = 2, 4, 8, 16, 16

    key = jax.random.PRNGKey(0)
    kx_, kp = jax.random.split(key)
    x = jax.random.normal(kx_, (B, Cin, H, W), dtype=jnp.float32)
    params = make_params(kp, Cin, Cout)

    for stride in (1, 2):
        fn = jax.jit(functools.partial(double_blaze_block_v2, stride=stride))
        out = jax.block_until_ready(fn(x, params))
        ref = jax.block_until_ready(reference(x, params, stride))
        assert out.shape == ref.shape == (B, Cout, H // stride, W // stride)
        max_err = float(jnp.max(jnp.abs(out - ref)))
        assert max_err < 2e-3, f"stride={stride} mismatch vs reference: {max_err}"

    print("KERNEL_OK")
</pallas_src>

<mosaic_0001>
module attributes {stable_mosaic.version = 11 : i64} {
  func.func @_double_blaze_kernel(%arg0: i32, %arg1: memref<2x1x20x80xf32, #tpu.memory_space<vmem>>, %arg2: memref<25x64xf32, #tpu.memory_space<vmem>>, %arg3: memref<64x64xf32, #tpu.memory_space<vmem>>, %arg4: memref<1x64xf32, #tpu.memory_space<vmem>>, %arg5: memref<5x80x128xf32, #tpu.memory_space<vmem>>, %arg6: memref<64x128xf32, #tpu.memory_space<vmem>>, %arg7: memref<1x128xf32, #tpu.memory_space<vmem>>, %arg8: memref<2x16x128xf32, #tpu.memory_space<vmem>>, %arg9: memref<2x20x80xf32, #tpu.memory_space<vmem>>) attributes {dimension_semantics = [#tpu.dimension_semantics<parallel>], iteration_bounds = array<i64: 1>, scalar_prefetch = 0 : i64, scratch_operands = 1 : i64, tpu.core_type = #tpu.core_type<tc>, window_params = [{transform_indices = @transform_0, window_bounds = array<i64: 2, 1, 20, 80>}, {pipeline_mode = #tpu.pipeline_mode<synchronous>, transform_indices = @transform_1, window_bounds = array<i64: 25, 64>}, {pipeline_mode = #tpu.pipeline_mode<synchronous>, transform_indices = @transform_2, window_bounds = array<i64: 64, 64>}, {pipeline_mode = #tpu.pipeline_mode<synchronous>, transform_indices = @transform_3, window_bounds = array<i64: 1, 64>}, {pipeline_mode = #tpu.pipeline_mode<synchronous>, transform_indices = @transform_4, window_bounds = array<i64: 5, 80, 128>}, {pipeline_mode = #tpu.pipeline_mode<synchronous>, transform_indices = @transform_5, window_bounds = array<i64: 64, 128>}, {pipeline_mode = #tpu.pipeline_mode<synchronous>, transform_indices = @transform_6, window_bounds = array<i64: 1, 128>}, {transform_indices = @transform_7, window_bounds = array<i64: 2, 16, 128>}]} {
    %c0 = arith.constant 0 : index
    %c0_0 = arith.constant 0 : index
    %c0_1 = arith.constant 0 : index
    %c0_2 = arith.constant 0 : index
    %0 = vector.load %arg1[%c0, %c0_0, %c0_1, %c0_2] : memref<2x1x20x80xf32, #tpu.memory_space<vmem>>, vector<2x1x20x80xf32>
    %c0_3 = arith.constant 0 : index
    %c0_4 = arith.constant 0 : index
    %1 = vector.load %arg2[%c0_3, %c0_4] : memref<25x64xf32, #tpu.memory_space<vmem>>, vector<25x64xf32>
    %cst = arith.constant 0.000000e+00 : f32
    %2 = vector.broadcast %cst : f32 to vector<2x16x64xf32>
    %3 = vector.extract_strided_slice %0 {offsets = [0, 0, 0, 0], sizes = [2, 1, 16, 64], strides = [1, 1, 1, 1]} : vector<2x1x20x80xf32> to vector<2x1x16x64xf32>
    %4 = vector.shape_cast %3 : vector<2x1x16x64xf32> to vector<2x16x64xf32>
    %5 = vector.extract_strided_slice %1 {offsets = [0, 0], sizes = [1, 64], strides = [1, 1]} : vector<25x64xf32> to vector<1x64xf32>
    %6 = vector.shape_cast %5 : vector<1x64xf32> to vector<64xf32>
    %7 = vector.shape_cast %6 : vector<64xf32> to vector<1x1x64xf32>
    %8 = vector.broadcast %7 : vector<1x1x64xf32> to vector<2x16x64xf32>
    %9 = arith.mulf %4, %8 : vector<2x16x64xf32>
    %10 = arith.addf %2, %9 : vector<2x16x64xf32>
    %11 = vector.extract_strided_slice %0 {offsets = [0, 0, 0, 4], sizes = [2, 1, 16, 64], strides = [1, 1, 1, 1]} : vector<2x1x20x80xf32> to vector<2x1x16x64xf32>
    %12 = vector.shape_cast %11 : vector<2x1x16x64xf32> to vector<2x16x64xf32>
    %13 = vector.extract_strided_slice %1 {offsets = [1, 0], sizes = [1, 64], strides = [1, 1]} : vector<25x64xf32> to vector<1x64xf32>
    %14 = vector.shape_cast %13 : vector<1x64xf32> to vector<64xf32>
    %15 = vector.shape_cast %14 : vector<64xf32> to vector<1x1x64xf32>
    %16 = vector.broadcast %15 : vector<1x1x64xf32> to vector<2x16x64xf32>
    %17 = arith.mulf %12, %16 : vector<2x16x64xf32>
    %18 = arith.addf %10, %17 : vector<2x16x64xf32>
    %19 = vector.extract_strided_slice %0 {offsets = [0, 0, 0, 8], sizes = [2, 1, 16, 64], strides = [1, 1, 1, 1]} : vector<2x1x20x80xf32> to vector<2x1x16x64xf32>
    %20 = vector.shape_cast %19 : vector<2x1x16x64xf32> to vector<2x16x64xf32>
    %21 = vector.extract_strided_slice %1 {offsets = [2, 0], sizes = [1, 64], strides = [1, 1]} : vector<25x64xf32> to vector<1x64xf32>
    %22 = vector.shape_cast %21 : vector<1x64xf32> to vector<64xf32>
    %23 = vector.shape_cast %22 : vector<64xf32> to vector<1x1x64xf32>
    %24 = vector.broadcast %23 : vector<1x1x64xf32> to vector<2x16x64xf32>
    %25 = arith.mulf %20, %24 : vector<2x16x64xf32>
    %26 = arith.addf %18, %25 : vector<2x16x64xf32>
    %27 = vector.extract_strided_slice %0 {offsets = [0, 0, 0, 12], sizes = [2, 1, 16, 64], strides = [1, 1, 1, 1]} : vector<2x1x20x80xf32> to vector<2x1x16x64xf32>
    %28 = vector.shape_cast %27 : vector<2x1x16x64xf32> to vector<2x16x64xf32>
    %29 = vector.extract_strided_slice %1 {offsets = [3, 0], sizes = [1, 64], strides = [1, 1]} : vector<25x64xf32> to vector<1x64xf32>
    %30 = vector.shape_cast %29 : vector<1x64xf32> to vector<64xf32>
    %31 = vector.shape_cast %30 : vector<64xf32> to vector<1x1x64xf32>
    %32 = vector.broadcast %31 : vector<1x1x64xf32> to vector<2x16x64xf32>
    %33 = arith.mulf %28, %32 : vector<2x16x64xf32>
    %34 = arith.addf %26, %33 : vector<2x16x64xf32>
    %35 = vector.extract_strided_slice %0 {offsets = [0, 0, 0, 16], sizes = [2, 1, 16, 64], strides = [1, 1, 1, 1]} : vector<2x1x20x80xf32> to vector<2x1x16x64xf32>
    %36 = vector.shape_cast %35 : vector<2x1x16x64xf32> to vector<2x16x64xf32>
    %37 = vector.extract_strided_slice %1 {offsets = [4, 0], sizes = [1, 64], strides = [1, 1]} : vector<25x64xf32> to vector<1x64xf32>
    %38 = vector.shape_cast %37 : vector<1x64xf32> to vector<64xf32>
    %39 = vector.shape_cast %38 : vector<64xf32> to vector<1x1x64xf32>
    %40 = vector.broadcast %39 : vector<1x1x64xf32> to vector<2x16x64xf32>
    %41 = arith.mulf %36, %40 : vector<2x16x64xf32>
    %42 = arith.addf %34, %41 : vector<2x16x64xf32>
    %43 = vector.extract_strided_slice %0 {offsets = [0, 0, 1, 0], sizes = [2, 1, 16, 64], strides = [1, 1, 1, 1]} : vector<2x1x20x80xf32> to vector<2x1x16x64xf32>
    %44 = vector.shape_cast %43 : vector<2x1x16x64xf32> to vector<2x16x64xf32>
    %45 = vector.extract_strided_slice %1 {offsets = [5, 0], sizes = [1, 64], strides = [1, 1]} : vector<25x64xf32> to vector<1x64xf32>
    %46 = vector.shape_cast %45 : vector<1x64xf32> to vector<64xf32>
    %47 = vector.shape_cast %46 : vector<64xf32> to vector<1x1x64xf32>
    %48 = vector.broadcast %47 : vector<1x1x64xf32> to vector<2x16x64xf32>
    %49 = arith.mulf %44, %48 : vector<2x16x64xf32>
    %50 = arith.addf %42, %49 : vector<2x16x64xf32>
    %51 = vector.extract_strided_slice %0 {offsets = [0, 0, 1, 4], sizes = [2, 1, 16, 64], strides = [1, 1, 1, 1]} : vector<2x1x20x80xf32> to vector<2x1x16x64xf32>
    %52 = vector.shape_cast %51 : vector<2x1x16x64xf32> to vector<2x16x64xf32>
    %53 = vector.extract_strided_slice %1 {offsets = [6, 0], sizes = [1, 64], strides = [1, 1]} : vector<25x64xf32> to vector<1x64xf32>
    %54 = vector.shape_cast %53 : vector<1x64xf32> to vector<64xf32>
    %55 = vector.shape_cast %54 : vector<64xf32> to vector<1x1x64xf32>
    %56 = vector.broadcast %55 : vector<1x1x64xf32> to vector<2x16x64xf32>
    %57 = arith.mulf %52, %56 : vector<2x16x64xf32>
    %58 = arith.addf %50, %57 : vector<2x16x64xf32>
    %59 = vector.extract_strided_slice %0 {offsets = [0, 0, 1, 8], sizes = [2, 1, 16, 64], strides = [1, 1, 1, 1]} : vector<2x1x20x80xf32> to vector<2x1x16x64xf32>
    %60 = vector.shape_cast %59 : vector<2x1x16x64xf32> to vector<2x16x64xf32>
    %61 = vector.extract_strided_slice %1 {offsets = [7, 0], sizes = [1, 64], strides = [1, 1]} : vector<25x64xf32> to vector<1x64xf32>
    %62 = vector.shape_cast %61 : vector<1x64xf32> to vector<64xf32>
    %63 = vector.shape_cast %62 : vector<64xf32> to vector<1x1x64xf32>
    %64 = vector.broadcast %63 : vector<1x1x64xf32> to vector<2x16x64xf32>
    %65 = arith.mulf %60, %64 : vector<2x16x64xf32>
    %66 = arith.addf %58, %65 : vector<2x16x64xf32>
    %67 = vector.extract_strided_slice %0 {offsets = [0, 0, 1, 12], sizes = [2, 1, 16, 64], strides = [1, 1, 1, 1]} : vector<2x1x20x80xf32> to vector<2x1x16x64xf32>
    %68 = vector.shape_cast %67 : vector<2x1x16x64xf32> to vector<2x16x64xf32>
    %69 = vector.extract_strided_slice %1 {offsets = [8, 0], sizes = [1, 64], strides = [1, 1]} : vector<25x64xf32> to vector<1x64xf32>
    %70 = vector.shape_cast %69 : vector<1x64xf32> to vector<64xf32>
    %71 = vector.shape_cast %70 : vector<64xf32> to vector<1x1x64xf32>
    %72 = vector.broadcast %71 : vector<1x1x64xf32> to vector<2x16x64xf32>
    %73 = arith.mulf %68, %72 : vector<2x16x64xf32>
    %74 = arith.addf %66, %73 : vector<2x16x64xf32>
    %75 = vector.extract_strided_slice %0 {offsets = [0, 0, 1, 16], sizes = [2, 1, 16, 64], strides = [1, 1, 1, 1]} : vector<2x1x20x80xf32> to vector<2x1x16x64xf32>
    %76 = vector.shape_cast %75 : vector<2x1x16x64xf32> to vector<2x16x64xf32>
    %77 = vector.extract_strided_slice %1 {offsets = [9, 0], sizes = [1, 64], strides = [1, 1]} : vector<25x64xf32> to vector<1x64xf32>
    %78 = vector.shape_cast %77 : vector<1x64xf32> to vector<64xf32>
    %79 = vector.shape_cast %78 : vector<64xf32> to vector<1x1x64xf32>
    %80 = vector.broadcast %79 : vector<1x1x64xf32> to vector<2x16x64xf32>
    %81 = arith.mulf %76, %80 : vector<2x16x64xf32>
    %82 = arith.addf %74, %81 : vector<2x16x64xf32>
    %83 = vector.extract_strided_slice %0 {offsets = [0, 0, 2, 0], sizes = [2, 1, 16, 64], strides = [1, 1, 1, 1]} : vector<2x1x20x80xf32> to vector<2x1x16x64xf32>
    %84 = vector.shape_cast %83 : vector<2x1x16x64xf32> to vector<2x16x64xf32>
    %85 = vector.extract_strided_slice %1 {offsets = [10, 0], sizes = [1, 64], strides = [1, 1]} : vector<25x64xf32> to vector<1x64xf32>
    %86 = vector.shape_cast %85 : vector<1x64xf32> to vector<64xf32>
    %87 = vector.shape_cast %86 : vector<64xf32> to vector<1x1x64xf32>
    %88 = vector.broadcast %87 : vector<1x1x64xf32> to vector<2x16x64xf32>
    %89 = arith.mulf %84, %88 : vector<2x16x64xf32>
    %90 = arith.addf %82, %89 : vector<2x16x64xf32>
    %91 = vector.extract_strided_slice %0 {offsets = [0, 0, 2, 4], sizes = [2, 1, 16, 64], strides = [1, 1, 1, 1]} : vector<2x1x20x80xf32> to vector<2x1x16x64xf32>
    %92 = vector.shape_cast %91 : vector<2x1x16x64xf32> to vector<2x16x64xf32>
    %93 = vector.extract_strided_slice %1 {offsets = [11, 0], sizes = [1, 64], strides = [1, 1]} : vector<25x64xf32> to vector<1x64xf32>
    %94 = vector.shape_cast %93 : vector<1x64xf32> to vector<64xf32>
    %95 = vector.shape_cast %94 : vector<64xf32> to vector<1x1x64xf32>
    %96 = vector.broadcast %95 : vector<1x1x64xf32> to vector<2x16x64xf32>
    %97 = arith.mulf %92, %96 : vector<2x16x64xf32>
    %98 = arith.addf %90, %97 : vector<2x16x64xf32>
    %99 = vector.extract_strided_slice %0 {offsets = [0, 0, 2, 8], sizes = [2, 1, 16, 64], strides = [1, 1, 1, 1]} : vector<2x1x20x80xf32> to vector<2x1x16x64xf32>
    %100 = vector.shape_cast %99 : vector<2x1x16x64xf32> to vector<2x16x64xf32>
    %101 = vector.extract_strided_slice %1 {offsets = [12, 0], sizes = [1, 64], strides = [1, 1]} : vector<25x64xf32> to vector<1x64xf32>
    %102 = vector.shape_cast %101 : vector<1x64xf32> to vector<64xf32>
    %103 = vector.shape_cast %102 : vector<64xf32> to vector<1x1x64xf32>
    %104 = vector.broadcast %103 : vector<1x1x64xf32> to vector<2x16x64xf32>
    %105 = arith.mulf %100, %104 : vector<2x16x64xf32>
    %106 = arith.addf %98, %105 : vector<2x16x64xf32>
    %107 = vector.extract_strided_slice %0 {offsets = [0, 0, 2, 12], sizes = [2, 1, 16, 64], strides = [1, 1, 1, 1]} : vector<2x1x20x80xf32> to vector<2x1x16x64xf32>
    %108 = vector.shape_cast %107 : vector<2x1x16x64xf32> to vector<2x16x64xf32>
    %109 = vector.extract_strided_slice %1 {offsets = [13, 0], sizes = [1, 64], strides = [1, 1]} : vector<25x64xf32> to vector<1x64xf32>
    %110 = vector.shape_cast %109 : vector<1x64xf32> to vector<64xf32>
    %111 = vector.shape_cast %110 : vector<64xf32> to vector<1x1x64xf32>
    %112 = vector.broadcast %111 : vector<1x1x64xf32> to vector<2x16x64xf32>
    %113 = arith.mulf %108, %112 : vector<2x16x64xf32>
    %114 = arith.addf %106, %113 : vector<2x16x64xf32>
    %115 = vector.extract_strided_slice %0 {offsets = [0, 0, 2, 16], sizes = [2, 1, 16, 64], strides = [1, 1, 1, 1]} : vector<2x1x20x80xf32> to vector<2x1x16x64xf32>
    %116 = vector.shape_cast %115 : vector<2x1x16x64xf32> to vector<2x16x64xf32>
    %117 = vector.extract_strided_slice %1 {offsets = [14, 0], sizes = [1, 64], strides = [1, 1]} : vector<25x64xf32> to vector<1x64xf32>
    %118 = vector.shape_cast %117 : vector<1x64xf32> to vector<64xf32>
    %119 = vector.shape_cast %118 : vector<64xf32> to vector<1x1x64xf32>
    %120 = vector.broadcast %119 : vector<1x1x64xf32> to vector<2x16x64xf32>
    %121 = arith.mulf %116, %120 : vector<2x16x64xf32>
    %122 = arith.addf %114, %121 : vector<2x16x64xf32>
    %123 = vector.extract_strided_slice %0 {offsets = [0, 0, 3, 0], sizes = [2, 1, 16, 64], strides = [1, 1, 1, 1]} : vector<2x1x20x80xf32> to vector<2x1x16x64xf32>
    %124 = vector.shape_cast %123 : vector<2x1x16x64xf32> to vector<2x16x64xf32>
    %125 = vector.extract_strided_slice %1 {offsets = [15, 0], sizes = [1, 64], strides = [1, 1]} : vector<25x64xf32> to vector<1x64xf32>
    %126 = vector.shape_cast %125 : vector<1x64xf32> to vector<64xf32>
    %127 = vector.shape_cast %126 : vector<64xf32> to vector<1x1x64xf32>
    %128 = vector.broadcast %127 : vector<1x1x64xf32> to vector<2x16x64xf32>
    %129 = arith.mulf %124, %128 : vector<2x16x64xf32>
    %130 = arith.addf %122, %129 : vector<2x16x64xf32>
    %131 = vector.extract_strided_slice %0 {offsets = [0, 0, 3, 4], sizes = [2, 1, 16, 64], strides = [1, 1, 1, 1]} : vector<2x1x20x80xf32> to vector<2x1x16x64xf32>
    %132 = vector.shape_cast %131 : vector<2x1x16x64xf32> to vector<2x16x64xf32>
    %133 = vector.extract_strided_slice %1 {offsets = [16, 0], sizes = [1, 64], strides = [1, 1]} : vector<25x64xf32> to vector<1x64xf32>
    %134 = vector.shape_cast %133 : vector<1x64xf32> to vector<64xf32>
    %135 = vector.shape_cast %134 : vector<64xf32> to vector<1x1x64xf32>
    %136 = vector.broadcast %135 : vector<1x1x64xf32> to vector<2x16x64xf32>
    %137 = arith.mulf %132, %136 : vector<2x16x64xf32>
    %138 = arith.addf %130, %137 : vector<2x16x64xf32>
    %139 = vector.extract_strided_slice %0 {offsets = [0, 0, 3, 8], sizes = [2, 1, 16, 64], strides = [1, 1, 1, 1]} : vector<2x1x20x80xf32> to vector<2x1x16x64xf32>
    %140 = vector.shape_cast %139 : vector<2x1x16x64xf32> to vector<2x16x64xf32>
    %141 = vector.extract_strided_slice %1 {offsets = [17, 0], sizes = [1, 64], strides = [1, 1]} : vector<25x64xf32> to vector<1x64xf32>
    %142 = vector.shape_cast %141 : vector<1x64xf32> to vector<64xf32>
    %143 = vector.shape_cast %142 : vector<64xf32> to vector<1x1x64xf32>
    %144 = vector.broadcast %143 : vector<1x1x64xf32> to vector<2x16x64xf32>
    %145 = arith.mulf %140, %144 : vector<2x16x64xf32>
    %146 = arith.addf %138, %145 : vector<2x16x64xf32>
    %147 = vector.extract_strided_slice %0 {offsets = [0, 0, 3, 12], sizes = [2, 1, 16, 64], strides = [1, 1, 1, 1]} : vector<2x1x20x80xf32> to vector<2x1x16x64xf32>
    %148 = vector.shape_cast %147 : vector<2x1x16x64xf32> to vector<2x16x64xf32>
    %149 = vector.extract_strided_slice %1 {offsets = [18, 0], sizes = [1, 64], strides = [1, 1]} : vector<25x64xf32> to vector<1x64xf32>
    %150 = vector.shape_cast %149 : vector<1x64xf32> to vector<64xf32>
    %151 = vector.shape_cast %150 : vector<64xf32> to vector<1x1x64xf32>
    %152 = vector.broadcast %151 : vector<1x1x64xf32> to vector<2x16x64xf32>
    %153 = arith.mulf %148, %152 : vector<2x16x64xf32>
    %154 = arith.addf %146, %153 : vector<2x16x64xf32>
    %155 = vector.extract_strided_slice %0 {offsets = [0, 0, 3, 16], sizes = [2, 1, 16, 64], strides = [1, 1, 1, 1]} : vector<2x1x20x80xf32> to vector<2x1x16x64xf32>
    %156 = vector.shape_cast %155 : vector<2x1x16x64xf32> to vector<2x16x64xf32>
    %157 = vector.extract_strided_slice %1 {offsets = [19, 0], sizes = [1, 64], strides = [1, 1]} : vector<25x64xf32> to vector<1x64xf32>
    %158 = vector.shape_cast %157 : vector<1x64xf32> to vector<64xf32>
    %159 = vector.shape_cast %158 : vector<64xf32> to vector<1x1x64xf32>
    %160 = vector.broadcast %159 : vector<1x1x64xf32> to vector<2x16x64xf32>
    %161 = arith.mulf %156, %160 : vector<2x16x64xf32>
    %162 = arith.addf %154, %161 : vector<2x16x64xf32>
    %163 = vector.extract_strided_slice %0 {offsets = [0, 0, 4, 0], sizes = [2, 1, 16, 64], strides = [1, 1, 1, 1]} : vector<2x1x20x80xf32> to vector<2x1x16x64xf32>
    %164 = vector.shape_cast %163 : vector<2x1x16x64xf32> to vector<2x16x64xf32>
    %165 = vector.extract_strided_slice %1 {offsets = [20, 0], sizes = [1, 64], strides = [1, 1]} : vector<25x64xf32> to vector<1x64xf32>
    %166 = vector.shape_cast %165 : vector<1x64xf32> to vector<64xf32>
    %167 = vector.shape_cast %166 : vector<64xf32> to vector<1x1x64xf32>
    %168 = vector.broadcast %167 : vector<1x1x64xf32> to vector<2x16x64xf32>
    %169 = arith.mulf %164, %168 : vector<2x16x64xf32>
    %170 = arith.addf %162, %169 : vector<2x16x64xf32>
    %171 = vector.extract_strided_slice %0 {offsets = [0, 0, 4, 4], sizes = [2, 1, 16, 64], strides = [1, 1, 1, 1]} : vector<2x1x20x80xf32> to vector<2x1x16x64xf32>
    %172 = vector.shape_cast %171 : vector<2x1x16x64xf32> to vector<2x16x64xf32>
    %173 = vector.extract_strided_slice %1 {offsets = [21, 0], sizes = [1, 64], strides = [1, 1]} : vector<25x64xf32> to vector<1x64xf32>
    %174 = vector.shape_cast %173 : vector<1x64xf32> to vector<64xf32>
    %175 = vector.shape_cast %174 : vector<64xf32> to vector<1x1x64xf32>
    %176 = vector.broadcast %175 : vector<1x1x64xf32> to vector<2x16x64xf32>
    %177 = arith.mulf %172, %176 : vector<2x16x64xf32>
    %178 = arith.addf %170, %177 : vector<2x16x64xf32>
    %179 = vector.extract_strided_slice %0 {offsets = [0, 0, 4, 8], sizes = [2, 1, 16, 64], strides = [1, 1, 1, 1]} : vector<2x1x20x80xf32> to vector<2x1x16x64xf32>
    %180 = vector.shape_cast %179 : vector<2x1x16x64xf32> to vector<2x16x64xf32>
    %181 = vector.extract_strided_slice %1 {offsets = [22, 0], sizes = [1, 64], strides = [1, 1]} : vector<25x64xf32> to vector<1x64xf32>
    %182 = vector.shape_cast %181 : vector<1x64xf32> to vector<64xf32>
    %183 = vector.shape_cast %182 : vector<64xf32> to vector<1x1x64xf32>
    %184 = vector.broadcast %183 : vector<1x1x64xf32> to vector<2x16x64xf32>
    %185 = arith.mulf %180, %184 : vector<2x16x64xf32>
    %186 = arith.addf %178, %185 : vector<2x16x64xf32>
    %187 = vector.extract_strided_slice %0 {offsets = [0, 0, 4, 12], sizes = [2, 1, 16, 64], strides = [1, 1, 1, 1]} : vector<2x1x20x80xf32> to vector<2x1x16x64xf32>
    %188 = vector.shape_cast %187 : vector<2x1x16x64xf32> to vector<2x16x64xf32>
    %189 = vector.extract_strided_slice %1 {offsets = [23, 0], sizes = [1, 64], strides = [1, 1]} : vector<25x64xf32> to vector<1x64xf32>
    %190 = vector.shape_cast %189 : vector<1x64xf32> to vector<64xf32>
    %191 = vector.shape_cast %190 : vector<64xf32> to vector<1x1x64xf32>
    %192 = vector.broadcast %191 : vector<1x1x64xf32> to vector<2x16x64xf32>
    %193 = arith.mulf %188, %192 : vector<2x16x64xf32>
    %194 = arith.addf %186, %193 : vector<2x16x64xf32>
    %195 = vector.extract_strided_slice %0 {offsets = [0, 0, 4, 16], sizes = [2, 1, 16, 64], strides = [1, 1, 1, 1]} : vector<2x1x20x80xf32> to vector<2x1x16x64xf32>
    %196 = vector.shape_cast %195 : vector<2x1x16x64xf32> to vector<2x16x64xf32>
    %197 = vector.extract_strided_slice %1 {offsets = [24, 0], sizes = [1, 64], strides = [1, 1]} : vector<25x64xf32> to vector<1x64xf32>
    %198 = vector.shape_cast %197 : vector<1x64xf32> to vector<64xf32>
    %199 = vector.shape_cast %198 : vector<64xf32> to vector<1x1x64xf32>
    %200 = vector.broadcast %199 : vector<1x1x64xf32> to vector<2x16x64xf32>
    %201 = arith.mulf %196, %200 : vector<2x16x64xf32>
    %202 = arith.addf %194, %201 : vector<2x16x64xf32>
    %203 = vector.shape_cast %202 : vector<2x16x64xf32> to vector<32x64xf32>
    %c0_5 = arith.constant 0 : index
    %c0_6 = arith.constant 0 : index
    %204 = vector.load %arg3[%c0_5, %c0_6] : memref<64x64xf32, #tpu.memory_space<vmem>>, vector<64x64xf32>
    %cst_7 = arith.constant dense<0.000000e+00> : vector<32x64xf32>
    %205 = tpu.matmul %203, %204, %cst_7 {dimension_numbers = #tpu.dot_dimension_numbers<[1], [0], [0], [1], [0, 0, 1, 1], [], []>} : vector<32x64xf32>, vector<64x64xf32>, vector<32x64xf32> -> vector<32x64xf32>
    %c0_8 = arith.constant 0 : index
    %c0_9 = arith.constant 0 : index
    %206 = vector.load %arg4[%c0_8, %c0_9] : memref<1x64xf32, #tpu.memory_space<vmem>>, vector<1x64xf32>
    %207 = vector.broadcast %206 : vector<1x64xf32> to vector<32x64xf32>
    %208 = arith.addf %205, %207 : vector<32x64xf32>
    %cst_10 = arith.constant 0.000000e+00 : f32
    %209 = vector.broadcast %cst_10 : f32 to vector<32x64xf32>
    %210 = arith.maximumf %208, %209 : vector<32x64xf32>
    %cst_11 = arith.constant 0.000000e+00 : f32
    %211 = vector.broadcast %cst_11 : f32 to vector<2x20x80xf32>
    %c0_12 = arith.constant 0 : index
    %c0_13 = arith.constant 0 : index
    %c0_14 = arith.constant 0 : index
    %212 = vector.load %arg9[%c0_12, %c0_13, %c0_14] : memref<2x20x80xf32, #tpu.memory_space<vmem>>, vector<2x20x80xf32>
    tpu.vector_store %arg9[%c0_12, %c0_13, %c0_14], %211 {strides = array<i32>} : memref<2x20x80xf32, #tpu.memory_space<vmem>>, vector<2x20x80xf32>,
    %213 = vector.shape_cast %210 : vector<32x64xf32> to vector<2x16x64xf32>
    %c0_15 = arith.constant 0 : index
    %c2 = arith.constant 2 : index
    %c8 = arith.constant 8 : index
    %214 = vector.load %arg9[%c0_15, %c2, %c8] : memref<2x20x80xf32, #tpu.memory_space<vmem>>, vector<2x16x64xf32>
    tpu.vector_store %arg9[%c0_15, %c2, %c8], %213 {strides = array<i32>} : memref<2x20x80xf32, #tpu.memory_space<vmem>>, vector<2x16x64xf32>,
    %215 = vector.extract_strided_slice %0 {offsets = [0, 0, 2, 8], sizes = [2, 1, 16, 64], strides = [1, 1, 1, 1]} : vector<2x1x20x80xf32> to vector<2x1x16x64xf32>
    %216 = vector.shape_cast %215 : vector<2x1x16x64xf32> to vector<2x16x64xf32>
    %217 = vector.shape_cast %216 : vector<2x16x64xf32> to vector<32x64xf32>
    %c0_16 = arith.constant 0 : index
    %c0_17 = arith.constant 0 : index
    %218 = vector.load %arg6[%c0_16, %c0_17] : memref<64x128xf32, #tpu.memory_space<vmem>>, vector<64x128xf32>
    %cst_18 = arith.constant dense<0.000000e+00> : vector<32x128xf32>
    %219 = tpu.matmul %217, %218, %cst_18 {dimension_numbers = #tpu.dot_dimension_numbers<[1], [0], [0], [1], [0, 0, 1, 1], [], []>} : vector<32x64xf32>, vector<64x128xf32>, vector<32x128xf32> -> vector<32x128xf32>
    %c0_19 = arith.constant 0 : index
    %c0_20 = arith.constant 0 : index
    %220 = vector.load %arg7[%c0_19, %c0_20] : memref<1x128xf32, #tpu.memory_space<vmem>>, vector<1x128xf32>
    %221 = vector.broadcast %220 : vector<1x128xf32> to vector<32x128xf32>
    %222 = arith.addf %219, %221 : vector<32x128xf32>
    %c0_21 = arith.constant 0 : index
    %c0_22 = arith.constant 0 : index
    %c0_23 = arith.constant 0 : index
    %223 = vector.load %arg9[%c0_21, %c0_22, %c0_23] : memref<2x20x80xf32, #tpu.memory_space<vmem>>, vector<2x16x80xf32>
    %224 = vector.shape_cast %223 : vector<2x16x80xf32> to vector<32x80xf32>
    %c0_24 = arith.constant 0 : index
    %c0_25 = arith.constant 0 : index
    %c0_26 = arith.constant 0 : index
    %225 = vector.load %arg5[%c0_24, %c0_25, %c0_26] : memref<5x80x128xf32, #tpu.memory_space<vmem>>, vector<1x80x128xf32>
    %226 = vector.shape_cast %225 : vector<1x80x128xf32> to vector<80x128xf32>
    %cst_27 = arith.constant dense<0.000000e+00> : vector<32x128xf32>
    %227 = tpu.matmul %224, %226, %cst_27 {dimension_numbers = #tpu.dot_dimension_numbers<[1], [0], [0], [1], [0, 0, 1, 1], [], []>} : vector<32x80xf32>, vector<80x128xf32>, vector<32x128xf32> -> vector<32x128xf32>
    %228 = arith.addf %222, %227 : vector<32x128xf32>
    %c0_28 = arith.constant 0 : index
    %c1 = arith.constant 1 : index
    %c0_29 = arith.constant 0 : index
    %229 = vector.load %arg9[%c0_28, %c1, %c0_29] : memref<2x20x80xf32, #tpu.memory_space<vmem>>, vector<2x16x80xf32>
    %230 = vector.shape_cast %229 : vector<2x16x80xf32> to vector<32x80xf32>
    %c1_30 = arith.constant 1 : index
    %c0_31 = arith.constant 0 : index
    %c0_32 = arith.constant 0 : index
    %231 = vector.load %arg5[%c1_30, %c0_31, %c0_32] : memref<5x80x128xf32, #tpu.memory_space<vmem>>, vector<1x80x128xf32>
    %232 = vector.shape_cast %231 : vector<1x80x128xf32> to vector<80x128xf32>
    %cst_33 = arith.constant dense<0.000000e+00> : vector<32x128xf32>
    %233 = tpu.matmul %230, %232, %cst_33 {dimension_numbers = #tpu.dot_dimension_numbers<[1], [0], [0], [1], [0, 0, 1, 1], [], []>} : vector<32x80xf32>, vector<80x128xf32>, vector<32x128xf32> -> vector<32x128xf32>
    %234 = arith.addf %228, %233 : vector<32x128xf32>
    %c0_34 = arith.constant 0 : index
    %c2_35 = arith.constant 2 : index
    %c0_36 = arith.constant 0 : index
    %235 = vector.load %arg9[%c0_34, %c2_35, %c0_36] : memref<2x20x80xf32, #tpu.memory_space<vmem>>, vector<2x16x80xf32>
    %236 = vector.shape_cast %235 : vector<2x16x80xf32> to vector<32x80xf32>
    %c2_37 = arith.constant 2 : index
    %c0_38 = arith.constant 0 : index
    %c0_39 = arith.constant 0 : index
    %237 = vector.load %arg5[%c2_37, %c0_38, %c0_39] : memref<5x80x128xf32, #tpu.memory_space<vmem>>, vector<1x80x128xf32>
    %238 = vector.shape_cast %237 : vector<1x80x128xf32> to vector<80x128xf32>
    %cst_40 = arith.constant dense<0.000000e+00> : vector<32x128xf32>
    %239 = tpu.matmul %236, %238, %cst_40 {dimension_numbers = #tpu.dot_dimension_numbers<[1], [0], [0], [1], [0, 0, 1, 1], [], []>} : vector<32x80xf32>, vector<80x128xf32>, vector<32x128xf32> -> vector<32x128xf32>
    %240 = arith.addf %234, %239 : vector<32x128xf32>
    %c0_41 = arith.constant 0 : index
    %c3 = arith.constant 3 : index
    %c0_42 = arith.constant 0 : index
    %241 = vector.load %arg9[%c0_41, %c3, %c0_42] : memref<2x20x80xf32, #tpu.memory_space<vmem>>, vector<2x16x80xf32>
    %242 = vector.shape_cast %241 : vector<2x16x80xf32> to vector<32x80xf32>
    %c3_43 = arith.constant 3 : index
    %c0_44 = arith.constant 0 : index
    %c0_45 = arith.constant 0 : index
    %243 = vector.load %arg5[%c3_43, %c0_44, %c0_45] : memref<5x80x128xf32, #tpu.memory_space<vmem>>, vector<1x80x128xf32>
    %244 = vector.shape_cast %243 : vector<1x80x128xf32> to vector<80x128xf32>
    %cst_46 = arith.constant dense<0.000000e+00> : vector<32x128xf32>
    %245 = tpu.matmul %242, %244, %cst_46 {dimension_numbers = #tpu.dot_dimension_numbers<[1], [0], [0], [1], [0, 0, 1, 1], [], []>} : vector<32x80xf32>, vector<80x128xf32>, vector<32x128xf32> -> vector<32x128xf32>
    %246 = arith.addf %240, %245 : vector<32x128xf32>
    %c0_47 = arith.constant 0 : index
    %c4 = arith.constant 4 : index
    %c0_48 = arith.constant 0 : index
    %247 = vector.load %arg9[%c0_47, %c4, %c0_48] : memref<2x20x80xf32, #tpu.memory_space<vmem>>, vector<2x16x80xf32>
    %248 = vector.shape_cast %247 : vector<2x16x80xf32> to vector<32x80xf32>
    %c4_49 = arith.constant 4 : index
    %c0_50 = arith.constant 0 : index
    %c0_51 = arith.constant 0 : index
    %249 = vector.load %arg5[%c4_49, %c0_50, %c0_51] : memref<5x80x128xf32, #tpu.memory_space<vmem>>, vector<1x80x128xf32>
    %250 = vector.shape_cast %249 : vector<1x80x128xf32> to vector<80x128xf32>
    %cst_52 = arith.constant dense<0.000000e+00> : vector<32x128xf32>
    %251 = tpu.matmul %248, %250, %cst_52 {dimension_numbers = #tpu.dot_dimension_numbers<[1], [0], [0], [1], [0, 0, 1, 1], [], []>} : vector<32x80xf32>, vector<80x128xf32>, vector<32x128xf32> -> vector<32x128xf32>
    %252 = arith.addf %246, %251 : vector<32x128xf32>
    %cst_53 = arith.constant 0.000000e+00 : f32
    %253 = vector.broadcast %cst_53 : f32 to vector<32x128xf32>
    %254 = arith.maximumf %252, %253 : vector<32x128xf32>
    %255 = vector.shape_cast %254 : vector<32x128xf32> to vector<2x16x128xf32>
    %c0_54 = arith.constant 0 : index
    %c0_55 = arith.constant 0 : index
    %c0_56 = arith.constant 0 : index
    %256 = vector.load %arg8[%c0_54, %c0_55, %c0_56] : memref<2x16x128xf32, #tpu.memory_space<vmem>>, vector<2x16x128xf32>
    tpu.vector_store %arg8[%c0_54, %c0_55, %c0_56], %255 {strides = array<i32>} : memref<2x16x128xf32, #tpu.memory_space<vmem>>, vector<2x16x128xf32>,
    return
  }
  func.func @transform_0(%arg0: i32) -> (i32, i32, i32, i32) {
    %c0_i32 = arith.constant 0 : i32
    %c0_i32_0 = arith.constant 0 : i32
    %c0_i32_1 = arith.constant 0 : i32
    %c0_i32_2 = arith.constant 0 : i32
    return %arg0, %c0_i32, %c0_i32_0, %c0_i32_1 : i32, i32, i32, i32
  }
  func.func @transform_1(%arg0: i32) -> (i32, i32) {
    %c0_i32 = arith.constant 0 : i32
    %c0_i32_0 = arith.constant 0 : i32
    %c0_i32_1 = arith.constant 0 : i32
    return %c0_i32, %c0_i32_0 : i32, i32
  }
  func.func @transform_2(%arg0: i32) -> (i32, i32) {
    %c0_i32 = arith.constant 0 : i32
    %c0_i32_0 = arith.constant 0 : i32
    %c0_i32_1 = arith.constant 0 : i32
    return %c0_i32, %c0_i32_0 : i32, i32
  }
  func.func @transform_3(%arg0: i32) -> (i32, i32) {
    %c0_i32 = arith.constant 0 : i32
    %c0_i32_0 = arith.constant 0 : i32
    %c0_i32_1 = arith.constant 0 : i32
    return %c0_i32, %c0_i32_0 : i32, i32
  }
  func.func @transform_4(%arg0: i32) -> (i32, i32, i32) {
    %c0_i32 = arith.constant 0 : i32
    %c0_i32_0 = arith.constant 0 : i32
    %c0_i32_1 = arith.constant 0 : i32
    %c0_i32_2 = arith.constant 0 : i32
    return %c0_i32, %c0_i32_0, %c0_i32_1 : i32, i32, i32
  }
  func.func @transform_5(%arg0: i32) -> (i32, i32) {
    %c0_i32 = arith.constant 0 : i32
    %c0_i32_0 = arith.constant 0 : i32
    %c0_i32_1 = arith.constant 0 : i32
    return %c0_i32, %c0_i32_0 : i32, i32
  }
  func.func @transform_6(%arg0: i32) -> (i32, i32) {
    %c0_i32 = arith.constant 0 : i32
    %c0_i32_0 = arith.constant 0 : i32
    %c0_i32_1 = arith.constant 0 : i32
    return %c0_i32, %c0_i32_0 : i32, i32
  }
  func.func @transform_7(%arg0: i32) -> (i32, i32, i32) {
    %c0_i32 = arith.constant 0 : i32
    %c0_i32_0 = arith.constant 0 : i32
    %c0_i32_1 = arith.constant 0 : i32
    return %arg0, %c0_i32, %c0_i32_0 : i32, i32, i32
  }
}

</mosaic_0001>

<llo_original>
// kernel: tile.140
$region0: #{tile.140}
  #allocation0 [shape = 's32[1]{0}', space=sflag, size = 0x4, scoped, tag = 'scoped memory for tile.140']
  %s0 = inlined_call_operand.vmem [shape: f32[4], index: 0, kind: input, shape index: {}]
  %s1 = inlined_call_operand.vmem [shape: f32[16,4], index: 1, kind: output, shape index: {}]
  // Predicated region
  $region2: #{tile.140} parent=0 // pred_check
    _
  $region3: #{tile.140} parent=0 // pred_check_branch
    %3 = sbr.rel (0) target = $region5
  $region4: #{tile.140} parent=0 // pred_region
    _
  $region5: #{tile.140} parent=0 // pred_fallthru
    _
  %v4 = vld [vmem:[%s0] ss:$0 sm:$0xff]
  %5 = vst [vmem:[%s1] sm:$0xff] %v4
  %s6 = scalar_lea.vmem %s1, 8
  %7 = vst [vmem:[%s6] sm:$0xff] %v4

// kernel: tile.201
$region0: #{tile.201}
  %s0 = inlined_call_operand.vmem [shape: f32[16,4], index: 0, kind: input, shape index: {}]
  %s1 = inlined_call_operand.vmem [shape: f32[1,64], index: 1, kind: output, shape index: {}]
  $region1: #{tile.201} parent=0
    #allocation0 [shape = 'u8[4096]{0}', space=vmem, size = 0x1000, scoped, tag = 'scoped mem for output reshape']
    %v2 = vld [vmem:[%s0] sm:$0x1]
    %vm3 = vcmask 31744
    %4 = vst.msk [vmem:[#allocation0] sm:$0x1] %vm3, %v2
    %s5 = scalar_lea.vmem %s0, 15
    %v6 = vld [vmem:[%s5] sm:$0x1]
    %7 = vrot.lane.b32.xlu0 %v6, 60
    %v8 = vpop.permute.xlu0 %7
    %vm9 = vcmask 523744
    %10 = vst.msk [vmem:[#allocation0] sm:$0x1] %vm9, %v8
    %s11 = scalar_lea.vmem %s0, 14
    %v12 = vld [vmem:[%s11] sm:$0x1]
    %13 = vrot.lane.b32.xlu0 %v12, 56
    %v14 = vpop.permute.xlu0 %13
    %vm15 = vcmask 490944
    %16 = vst.msk [vmem:[#allocation0] sm:$0x1] %vm15, %v14
    %s17 = scalar_lea.vmem %s0, 13
    %v18 = vld [vmem:[%s17] sm:$0x1]
    %19 = vrot.lane.b32.xlu0 %v18, 52
    %v20 = vpop.permute.xlu0 %19
    %vm21 = vcmask 458144
    %22 = vst.msk [vmem:[#allocation0] sm:$0x1] %vm21, %v20
    %s23 = scalar_lea.vmem %s0, 12
    %v24 = vld [vmem:[%s23] sm:$0x1]
    %25 = vrot.lane.b32.xlu0 %v24, 48
    %v26 = vpop.permute.xlu0 %25
    %vm27 = vcmask 425344
    %28 = vst.msk [vmem:[#allocation0] sm:$0x1] %vm27, %v26
    %s29 = scalar_lea.vmem %s0, 11
    %v30 = vld [vmem:[%s29] sm:$0x1]
    %31 = vrot.lane.b32.xlu0 %v30, 44
    %v32 = vpop.permute.xlu0 %31
    %vm33 = vcmask 392544
    %34 = vst.msk [vmem:[#allocation0] sm:$0x1] %vm33, %v32
    %s35 = scalar_lea.vmem %s0, 10
    %v36 = vld [vmem:[%s35] sm:$0x1]
    %37 = vrot.lane.b32.xlu0 %v36, 40
    %v38 = vpop.permute.xlu0 %37
    %vm39 = vcmask 359744
    %40 = vst.msk [vmem:[#allocation0] sm:$0x1] %vm39, %v38
    %s41 = scalar_lea.vmem %s0, 9
    %v42 = vld [vmem:[%s41] sm:$0x1]
    %43 = vrot.lane.b32.xlu0 %v42, 36
    %v44 = vpop.permute.xlu0 %43
    %vm45 = vcmask 326944
    %46 = vst.msk [vmem:[#allocation0] sm:$0x1] %vm45, %v44
    %s47 = scalar_lea.vmem %s0, 8
    %v48 = vld [vmem:[%s47] sm:$0x1]
    %49 = vrot.lane.b32.xlu0 %v48, 32
    %v50 = vpop.permute.xlu0 %49
    %vm51 = vcmask 294144
    %52 = vst.msk [vmem:[#allocation0] sm:$0x1] %vm51, %v50
    %s53 = scalar_lea.vmem %s0, 7
    %v54 = vld [vmem:[%s53] sm:$0x1]
    %55 = vrot.lane.b32.xlu0 %v54, 28
    %v56 = vpop.permute.xlu0 %55
    %vm57 = vcmask 261344
    %58 = vst.msk [vmem:[#allocation0] sm:$0x1] %vm57, %v56
    %s59 = scalar_lea.vmem %s0, 6
    %v60 = vld [vmem:[%s59] sm:$0x1]
    %61 = vrot.lane.b32.xlu0 %v60, 24
    %v62 = vpop.permute.xlu0 %61
    %vm63 = vcmask 228544
    %64 = vst.msk [vmem:[#allocation0] sm:$0x1] %vm63, %v62
    %s65 = scalar_lea.vmem %s0, 5
    %v66 = vld [vmem:[%s65] sm:$0x1]
    %67 = vrot.lane.b32.xlu0 %v66, 20
    %v68 = vpop.permute.xlu0 %67
    %vm69 = vcmask 195744
    %70 = vst.msk [vmem:[#allocation0] sm:$0x1] %vm69, %v68
    %s71 = scalar_lea.vmem %s0, 4
    %v72 = vld [vmem:[%s71] sm:$0x1]
    %73 = vrot.lane.b32.xlu0 %v72, 16
    %v74 = vpop.permute.xlu0 %73
    %vm75 = vcmask 162944
    %76 = vst.msk [vmem:[#allocation0] sm:$0x1] %vm75, %v74
    %s77 = scalar_lea.vmem %s0, 3
    %v78 = vld [vmem:[%s77] sm:$0x1]
    %79 = vrot.lane.b32.xlu0 %v78, 12
    %v80 = vpop.permute.xlu0 %79
    %vm81 = vcmask 130144
    %82 = vst.msk [vmem:[#allocation0] sm:$0x1] %vm81, %v80
    %s83 = scalar_lea.vmem %s0, 2
    %v84 = vld [vmem:[%s83] sm:$0x1]
    %85 = vrot.lane.b32.xlu0 %v84, 8
    %v86 = vpop.permute.xlu0 %85
    %vm87 = vcmask 97344
    %88 = vst.msk [vmem:[#allocation0] sm:$0x1] %vm87, %v86
    %s89 = scalar_lea.vmem %s0, 1
    %v90 = vld [vmem:[%s89] sm:$0x1]
    %91 = vrot.lane.b32.xlu0 %v90, 4
    %v92 = vpop.permute.xlu0 %91
    %vm93 = vcmask 64544
    %94 = vst.msk [vmem:[#allocation0] sm:$0x1] %vm93, %v92
    %s96 = sshll.u32 1, 1
    %s97 = ssub.s32 %s96, 1
    %v99 = vld [vmem:[#allocation0] sm:%s97]
    %s100 = sshll.u32 1, 1
    %s101 = ssub.s32 %s100, 1
    %102 = vst [vmem:[%s1] sm:%s101] %v99

// kernel: tile.118
$region0: #{tile.118}
  #allocation0 [shape = 's32[1]{0}', space=sflag, size = 0x4, scoped, tag = 'scoped memory for tile.118']
  %s0 = inlined_call_operand.vmem [shape: f32[8], index: 0, kind: input, shape index: {}]
  %s1 = inlined_call_operand.vmem [shape: f32[16,8], index: 1, kind: output, shape index: {}]
  // Predicated region
  $region2: #{tile.118} parent=0 // pred_check
    _
  $region3: #{tile.118} parent=0 // pred_check_branch
    %3 = sbr.rel (0) target = $region5
  $region4: #{tile.118} parent=0 // pred_region
    _
  $region5: #{tile.118} parent=0 // pred_fallthru
    _
  %v4 = vld [vmem:[%s0] ss:$0 sm:$0xff]
  %5 = vst [vmem:[%s1] sm:$0xff] %v4
  %s6 = scalar_lea.vmem %s1, 8
  %7 = vst [vmem:[%s6] sm:$0xff] %v4

// kernel: tile.119
$region0: #{tile.119}
  %s0 = inlined_call_operand.vmem [shape: f32[16,8], index: 0, kind: input, shape index: {}]
  %s1 = inlined_call_operand.vmem [shape: f32[1,128], index: 1, kind: output, shape index: {}]
  $region1: #{tile.119} parent=0
    #allocation0 [shape = 'u8[4096]{0}', space=vmem, size = 0x1000, scoped, tag = 'scoped mem for output reshape']
    %v2 = vld [vmem:[%s0] sm:$0x1]
    %vm3 = vcmask 64512
    %4 = vst.msk [vmem:[#allocation0] sm:$0x1] %vm3, %v2
    %s5 = scalar_lea.vmem %s0, 15
    %v6 = vld [vmem:[%s5] sm:$0x1]
    %7 = vrot.lane.b32.xlu0 %v6, 120
    %v8 = vpop.permute.xlu0 %7
    %vm9 = vcmask 1048512
    %10 = vst.msk [vmem:[#allocation0] sm:$0x1] %vm9, %v8
    %s11 = scalar_lea.vmem %s0, 14
    %v12 = vld [vmem:[%s11] sm:$0x1]
    %13 = vrot.lane.b32.xlu0 %v12, 112
    %v14 = vpop.permute.xlu0 %13
    %vm15 = vcmask 982912
    %16 = vst.msk [vmem:[#allocation0] sm:$0x1] %vm15, %v14
    %s17 = scalar_lea.vmem %s0, 13
    %v18 = vld [vmem:[%s17] sm:$0x1]
    %19 = vrot.lane.b32.xlu0 %v18, 104
    %v20 = vpop.permute.xlu0 %19
    %vm21 = vcmask 917312
    %22 = vst.msk [vmem:[#allocation0] sm:$0x1] %vm21, %v20
    %s23 = scalar_lea.vmem %s0, 12
    %v24 = vld [vmem:[%s23] sm:$0x1]
    %25 = vrot.lane.b32.xlu0 %v24, 96
    %v26 = vpop.permute.xlu0 %25
    %vm27 = vcmask 851712
    %28 = vst.msk [vmem:[#allocation0] sm:$0x1] %vm27, %v26
    %s29 = scalar_lea.vmem %s0, 11
    %v30 = vld [vmem:[%s29] sm:$0x1]
    %31 = vrot.lane.b32.xlu0 %v30, 88
    %v32 = vpop.permute.xlu0 %31
    %vm33 = vcmask 786112
    %34 = vst.msk [vmem:[#allocation0] sm:$0x1] %vm33, %v32
    %s35 = scalar_lea.vmem %s0, 10
    %v36 = vld [vmem:[%s35] sm:$0x1]
    %37 = vrot.lane.b32.xlu0 %v36, 80
    %v38 = vpop.permute.xlu0 %37
    %vm39 = vcmask 720512
    %40 = vst.msk [vmem:[#allocation0] sm:$0x1] %vm39, %v38
    %s41 = scalar_lea.vmem %s0, 9
    %v42 = vld [vmem:[%s41] sm:$0x1]
    %43 = vrot.lane.b32.xlu0 %v42, 72
    %v44 = vpop.permute.xlu0 %43
    %vm45 = vcmask 654912
    %46 = vst.msk [vmem:[#allocation0] sm:$0x1] %vm45, %v44
    %s47 = scalar_lea.vmem %s0, 8
    %v48 = vld [vmem:[%s47] sm:$0x1]
    %49 = vrot.lane.b32.xlu0 %v48, 64
    %v50 = vpop.permute.xlu0 %49
    %vm51 = vcmask 589312
    %52 = vst.msk [vmem:[#allocation0] sm:$0x1] %vm51, %v50
    %s53 = scalar_lea.vmem %s0, 7
    %v54 = vld [vmem:[%s53] sm:$0x1]
    %55 = vrot.lane.b32.xlu0 %v54, 56
    %v56 = vpop.permute.xlu0 %55
    %vm57 = vcmask 523712
    %58 = vst.msk [vmem:[#allocation0] sm:$0x1] %vm57, %v56
    %s59 = scalar_lea.vmem %s0, 6
    %v60 = vld [vmem:[%s59] sm:$0x1]
    %61 = vrot.lane.b32.xlu0 %v60, 48
    %v62 = vpop.permute.xlu0 %61
    %vm63 = vcmask 458112
    %64 = vst.msk [vmem:[#allocation0] sm:$0x1] %vm63, %v62
    %s65 = scalar_lea.vmem %s0, 5
    %v66 = vld [vmem:[%s65] sm:$0x1]
    %67 = vrot.lane.b32.xlu0 %v66, 40
    %v68 = vpop.permute.xlu0 %67
    %vm69 = vcmask 392512
    %70 = vst.msk [vmem:[#allocation0] sm:$0x1] %vm69, %v68
    %s71 = scalar_lea.vmem %s0, 4
    %v72 = vld [vmem:[%s71] sm:$0x1]
    %73 = vrot.lane.b32.xlu0 %v72, 32
    %v74 = vpop.permute.xlu0 %73
    %vm75 = vcmask 326912
    %76 = vst.msk [vmem:[#allocation0] sm:$0x1] %vm75, %v74
    %s77 = scalar_lea.vmem %s0, 3
    %v78 = vld [vmem:[%s77] sm:$0x1]
    %79 = vrot.lane.b32.xlu0 %v78, 24
    %v80 = vpop.permute.xlu0 %79
    %vm81 = vcmask 261312
    %82 = vst.msk [vmem:[#allocation0] sm:$0x1] %vm81, %v80
    %s83 = scalar_lea.vmem %s0, 2
    %v84 = vld [vmem:[%s83] sm:$0x1]
    %85 = vrot.lane.b32.xlu0 %v84, 16
    %v86 = vpop.permute.xlu0 %85
    %vm87 = vcmask 195712
    %88 = vst.msk [vmem:[#allocation0] sm:$0x1] %vm87, %v86
    %s89 = scalar_lea.vmem %s0, 1
    %v90 = vld [vmem:[%s89] sm:$0x1]
    %91 = vrot.lane.b32.xlu0 %v90, 8
    %v92 = vpop.permute.xlu0 %91
    %vm93 = vcmask 130112
    %94 = vst.msk [vmem:[#allocation0] sm:$0x1] %vm93, %v92
    %s96 = sshll.u32 1, 1
    %s97 = ssub.s32 %s96, 1
    %v99 = vld [vmem:[#allocation0] sm:%s97]
    %s100 = sshll.u32 1, 1
    %s101 = ssub.s32 %s100, 1
    %102 = vst [vmem:[%s1] sm:%s101] %v99

// kernel: double_blaze_block_v2.1
$region0: #{double_blaze_block_v2.1}
  #allocation0 [shape = 'u32[]', space=smem, size = 0x4, offset = 0x4, fixed_abs, tag = 'smem constant byte address 0x4 - core index']
  #allocation1 [shape = 'u32[144,128]{1,0:T(1,128)}', space=vmem, size = 0x12000, scoped, tag = 'internal scratch']
  #allocation2 [shape = 'f32[2,20,80]{2,1,0:T(8,128)}', space=vmem, size = 0x6000, scoped, tag = 'scratch operand']
  %s0 = inlined_call_operand.vmem [shape: f32[2,1,20,80], index: 0, kind: input, shape index: {}]
  %s1 = inlined_call_operand.vmem [shape: f32[25,64], index: 1, kind: input, shape index: {}]
  %s2 = inlined_call_operand.vmem [shape: f32[64,64], index: 2, kind: input, shape index: {}]
  %s3 = inlined_call_operand.vmem [shape: f32[1,64], index: 3, kind: input, shape index: {}]
  %s4 = inlined_call_operand.vmem [shape: f32[5,80,128], index: 4, kind: input, shape index: {}]
  %s5 = inlined_call_operand.vmem [shape: f32[64,128], index: 5, kind: input, shape index: {}]
  %s6 = inlined_call_operand.vmem [shape: f32[1,128], index: 6, kind: input, shape index: {}]
  %s7 = inlined_call_operand.vmem [shape: f32[2,16,128], index: 7, kind: output, shape index: {}]
  %s8 = sld [smem:[#allocation0]]
  $region38: #{double_blaze_block_v2.1} parent=0
    _
  %s10 = ssub.s32 1, %s8
  %s11 = scalar_select 0, %s10, %s8
  // Predicated region
  $region2: #{double_blaze_block_v2.1} parent=0 // pred_check
    _
  $region3: #{double_blaze_block_v2.1} parent=0 // pred_check_branch
    %13 = sbr.rel (0) target = $region5
  $region4: #{double_blaze_block_v2.1} parent=0 // pred_region
    _
  $region5: #{double_blaze_block_v2.1} parent=0 // pred_fallthru
    _
  // Predicated region
  $region6: #{double_blaze_block_v2.1} parent=0 // pred_check
    _
  $region7: #{double_blaze_block_v2.1} parent=0 // pred_check_branch
    %15 = sbr.rel (0) target = $region9
  $region8: #{double_blaze_block_v2.1} parent=0 // pred_region
    _
  $region9: #{double_blaze_block_v2.1} parent=0 // pred_fallthru
    _
  // Predicated region
  $region10: #{double_blaze_block_v2.1} parent=0 // pred_check
    _
  $region11: #{double_blaze_block_v2.1} parent=0 // pred_check_branch
    %17 = sbr.rel (0) target = $region13
  $region12: #{double_blaze_block_v2.1} parent=0 // pred_region
    _
  $region13: #{double_blaze_block_v2.1} parent=0 // pred_fallthru
    _
  // Predicated region
  $region14: #{double_blaze_block_v2.1} parent=0 // pred_check
    _
  $region15: #{double_blaze_block_v2.1} parent=0 // pred_check_branch
    %19 = sbr.rel (0) target = $region17
  $region16: #{double_blaze_block_v2.1} parent=0 // pred_region
    _
  $region17: #{double_blaze_block_v2.1} parent=0 // pred_fallthru
    _
  // Predicated region
  $region18: #{double_blaze_block_v2.1} parent=0 // pred_check
    _
  $region19: #{double_blaze_block_v2.1} parent=0 // pred_check_branch
    %21 = sbr.rel (0) target = $region21
  $region20: #{double_blaze_block_v2.1} parent=0 // pred_region
    _
  $region21: #{double_blaze_block_v2.1} parent=0 // pred_fallthru
    _
  // Predicated region
  $region22: #{double_blaze_block_v2.1} parent=0 // pred_check
    _
  $region23: #{double_blaze_block_v2.1} parent=0 // pred_check_branch
    %23 = sbr.rel (0) target = $region25
  $region24: #{double_blaze_block_v2.1} parent=0 // pred_region
    _
  $region25: #{double_blaze_block_v2.1} parent=0 // pred_fallthru
    _
  // Predicated region
  $region26: #{double_blaze_block_v2.1} parent=0 // pred_check
    _
  $region27: #{double_blaze_block_v2.1} parent=0 // pred_check_branch
    %25 = sbr.rel (0) target = $region29
  $region28: #{double_blaze_block_v2.1} parent=0 // pred_region
    _
  $region29: #{double_blaze_block_v2.1} parent=0 // pred_fallthru
    _
  %v26 = vld [vmem:[%s0] sm:$0xff]
  %v27 = vld [vmem:[%s0 + $0x8] sm:$0xff]
  %v28 = vld [vmem:[%s0 + $0x10] sm:$0xf]
  %v29 = vld [vmem:[%s0 + $0x18] sm:$0xff]
  %v30 = vld [vmem:[%s0 + $0x20] sm:$0xff]
  %v31 = vld [vmem:[%s0 + $0x28] sm:$0xf]
  %v32 = vld [vmem:[%s1] sm:$0xff]
  %v33 = vld [vmem:[%s1 + $0x8] sm:$0xff]
  %v34 = vld [vmem:[%s1 + $0x10] sm:$0xff]
  %v35 = vld [vmem:[%s1 + $0x18] sm:$0x1]
  %v36 = vlaneseq
  %v37 = vshrl.u32 %v36, 7
  %v38 = vsub.s32 0, %v37
  %v39 = vrot.slane %v32, %v38
  %v40 = vmul.f32 %v26, %v39
  %v41 = vmul.f32 %v27, %v39
  %v42 = vmul.f32 %v29, %v39
  %v43 = vmul.f32 %v30, %v39
  %v44 = vadd.f32 %v40, 0.0
  %v45 = vadd.f32 %v41, 0.0
  %v46 = vadd.f32 %v42, 0.0
  %v47 = vadd.f32 %v43, 0.0
  %v48 = vlaneseq
  %v49 = vshrl.u32 %v48, 7
  %v50 = vsub.s32 1, %v49
  %v51 = vrot.slane %v32, %v50
  %53 = vrot.lane.b32.xlu0 %v51, 4
  %v54 = vpop.permute.xlu0 %53
  %v56 = vmul.f32 %v26, %v54
  %v57 = vmul.f32 %v27, %v54
  %v58 = vmul.f32 %v29, %v54
  %v59 = vmul.f32 %v30, %v54
  %64 = vrot.lane.b32.xlu0 %v56, 124
  %v65 = vpop.permute.xlu0 %64
  %66 = vrot.lane.b32.xlu0 %v57, 124
  %v67 = vpop.permute.xlu0 %66
  %68 = vrot.lane.b32.xlu0 %v58, 124
  %v69 = vpop.permute.xlu0 %68
  %70 = vrot.lane.b32.xlu0 %v59, 124
  %v71 = vpop.permute.xlu0 %70
  %v76 = vadd.f32 %v44, %v65
  %v77 = vadd.f32 %v45, %v67
  %v78 = vadd.f32 %v46, %v69
  %v79 = vadd.f32 %v47, %v71
  %v80 = vlaneseq
  %v81 = vshrl.u32 %v80, 7
  %v82 = vsub.s32 2, %v81
  %v83 = vrot.slane %v32, %v82
  %85 = vrot.lane.b32.xlu0 %v83, 8
  %v86 = vpop.permute.xlu0 %85
  %v88 = vmul.f32 %v26, %v86
  %v89 = vmul.f32 %v27, %v86
  %v90 = vmul.f32 %v29, %v86
  %v91 = vmul.f32 %v30, %v86
  %96 = vrot.lane.b32.xlu0 %v88, 120
  %v97 = vpop.permute.xlu0 %96
  %98 = vrot.lane.b32.xlu0 %v89, 120
  %v99 = vpop.permute.xlu0 %98
  %100 = vrot.lane.b32.xlu0 %v90, 120
  %v101 = vpop.permute.xlu0 %100
  %102 = vrot.lane.b32.xlu0 %v91, 120
  %v103 = vpop.permute.xlu0 %102
  %v108 = vadd.f32 %v76, %v97
  %v109 = vadd.f32 %v77, %v99
  %v110 = vadd.f32 %v78, %v101
  %v111 = vadd.f32 %v79, %v103
  %v112 = vlaneseq
  %v113 = vshrl.u32 %v112, 7
  %v114 = vsub.s32 3, %v113
  %v115 = vrot.slane %v32, %v114
  %117 = vrot.lane.b32.xlu0 %v115, 12
  %v118 = vpop.permute.xlu0 %117
  %v120 = vmul.f32 %v26, %v118
  %v121 = vmul.f32 %v27, %v118
  %v122 = vmul.f32 %v29, %v118
  %v123 = vmul.f32 %v30, %v118
  %128 = vrot.lane.b32.xlu0 %v120, 116
  %v129 = vpop.permute.xlu0 %128
  %130 = vrot.lane.b32.xlu0 %v121, 116
  %v131 = vpop.permute.xlu0 %130
  %132 = vrot.lane.b32.xlu0 %v122, 116
  %v133 = vpop.permute.xlu0 %132
  %134 = vrot.lane.b32.xlu0 %v123, 116
  %v135 = vpop.permute.xlu0 %134
  %v140 = vadd.f32 %v108, %v129
  %v141 = vadd.f32 %v109, %v131
  %v142 = vadd.f32 %v110, %v133
  %v143 = vadd.f32 %v111, %v135
  %v144 = vlaneseq
  %v145 = vshrl.u32 %v144, 7
  %v146 = vsub.s32 4, %v145
  %v147 = vrot.slane %v32, %v146
  %149 = vrot.lane.b32.xlu0 %v147, 16
  %v150 = vpop.permute.xlu0 %149
  %v152 = vmul.f32 %v26, %v150
  %v153 = vmul.f32 %v27, %v150
  %v154 = vmul.f32 %v29, %v150
  %v155 = vmul.f32 %v30, %v150
  %160 = vrot.lane.b32.xlu0 %v152, 112
  %v161 = vpop.permute.xlu0 %160
  %162 = vrot.lane.b32.xlu0 %v153, 112
  %v163 = vpop.permute.xlu0 %162
  %164 = vrot.lane.b32.xlu0 %v154, 112
  %v165 = vpop.permute.xlu0 %164
  %166 = vrot.lane.b32.xlu0 %v155, 112
  %v167 = vpop.permute.xlu0 %166
  %v172 = vadd.f32 %v140, %v161
  %v173 = vadd.f32 %v141, %v163
  %v174 = vadd.f32 %v142, %v165
  %v175 = vadd.f32 %v143, %v167
  %v176 = vlaneseq
  %v177 = vshrl.u32 %v176, 7
  %v178 = vsub.s32 5, %v177
  %v179 = vrot.slane %v32, %v178
  %v180 = vmul.f32 %v26, %v179
  %v181 = vmul.f32 %v27, %v179
  %v182 = vmul.f32 %v28, %v179
  %v183 = vmul.f32 %v29, %v179
  %v184 = vmul.f32 %v30, %v179
  %v185 = vmul.f32 %v31, %v179
  %vm192 = vcmask 1046528
  %v193 = vrot.slane %v180, 1
  %v194 = vrot.slane %v181, 1
  %v195 = vsel %vm192, %v193, %v194
  %v196 = vrot.slane %v182, 1
  %v197 = vsel %vm192, %v194, %v196
  %v198 = vrot.slane %v183, 1
  %v199 = vrot.slane %v184, 1
  %v200 = vsel %vm192, %v198, %v199
  %v201 = vrot.slane %v185, 1
  %v202 = vsel %vm192, %v199, %v201
  %v207 = vadd.f32 %v172, %v195
  %v208 = vadd.f32 %v173, %v197
  %v209 = vadd.f32 %v174, %v200
  %v210 = vadd.f32 %v175, %v202
  %v211 = vlaneseq
  %v212 = vshrl.u32 %v211, 7
  %v213 = vsub.s32 6, %v212
  %v214 = vrot.slane %v32, %v213
  %216 = vrot.lane.b32.xlu0 %v214, 4
  %v217 = vpop.permute.xlu0 %216
  %v219 = vmul.f32 %v26, %v217
  %v220 = vmul.f32 %v27, %v217
  %v221 = vmul.f32 %v28, %v217
  %v222 = vmul.f32 %v29, %v217
  %v223 = vmul.f32 %v30, %v217
  %v224 = vmul.f32 %v31, %v217
  %v231 = vrot.slane %v219, 1
  %v232 = vrot.slane %v220, 1
  %v233 = vsel %vm192, %v231, %v232
  %v234 = vrot.slane %v221, 1
  %v235 = vsel %vm192, %v232, %v234
  %v236 = vrot.slane %v222, 1
  %v237 = vrot.slane %v223, 1
  %v238 = vsel %vm192, %v236, %v237
  %v239 = vrot.slane %v224, 1
  %v240 = vsel %vm192, %v237, %v239
  %241 = vrot.lane.b32.xlu0 %v233, 124
  %v242 = vpop.permute.xlu0 %241
  %243 = vrot.lane.b32.xlu0 %v235, 124
  %v244 = vpop.permute.xlu0 %243
  %245 = vrot.lane.b32.xlu0 %v238, 124
  %v246 = vpop.permute.xlu0 %245
  %247 = vrot.lane.b32.xlu0 %v240, 124
  %v248 = vpop.permute.xlu0 %247
  %v253 = vadd.f32 %v207, %v242
  %v254 = vadd.f32 %v208, %v244
  %v255 = vadd.f32 %v209, %v246
  %v256 = vadd.f32 %v210, %v248
  %v257 = vlaneseq
  %v258 = vshrl.u32 %v257, 7
  %v259 = vsub.s32 7, %v258
  %v260 = vrot.slane %v32, %v259
  %262 = vrot.lane.b32.xlu0 %v260, 8
  %v263 = vpop.permute.xlu0 %262
  %v265 = vmul.f32 %v26, %v263
  %v266 = vmul.f32 %v27, %v263
  %v267 = vmul.f32 %v28, %v263
  %v268 = vmul.f32 %v29, %v263
  %v269 = vmul.f32 %v30, %v263
  %v270 = vmul.f32 %v31, %v263
  %v277 = vrot.slane %v265, 1
  %v278 = vrot.slane %v266, 1
  %v279 = vsel %vm192, %v277, %v278
  %v280 = vrot.slane %v267, 1
  %v281 = vsel %vm192, %v278, %v280
  %v282 = vrot.slane %v268, 1
  %v283 = vrot.slane %v269, 1
  %v284 = vsel %vm192, %v282, %v283
  %v285 = vrot.slane %v270, 1
  %v286 = vsel %vm192, %v283, %v285
  %287 = vrot.lane.b32.xlu0 %v279, 120
  %v288 = vpop.permute.xlu0 %287
  %289 = vrot.lane.b32.xlu0 %v281, 120
  %v290 = vpop.permute.xlu0 %289
  %291 = vrot.lane.b32.xlu0 %v284, 120
  %v292 = vpop.permute.xlu0 %291
  %293 = vrot.lane.b32.xlu0 %v286, 120
  %v294 = vpop.permute.xlu0 %293
  %v299 = vadd.f32 %v253, %v288
  %v300 = vadd.f32 %v254, %v290
  %v301 = vadd.f32 %v255, %v292
  %v302 = vadd.f32 %v256, %v294
  %v303 = vlaneseq
  %v304 = vshrl.u32 %v303, 7
  %v305 = vsub.s32 0, %v304
  %v306 = vrot.slane %v33, %v305
  %308 = vrot.lane.b32.xlu0 %v306, 12
  %v309 = vpop.permute.xlu0 %308
  %v311 = vmul.f32 %v26, %v309
  %v312 = vmul.f32 %v27, %v309
  %v313 = vmul.f32 %v28, %v309
  %v314 = vmul.f32 %v29, %v309
  %v315 = vmul.f32 %v30, %v309
  %v316 = vmul.f32 %v31, %v309
  %v323 = vrot.slane %v311, 1
  %v324 = vrot.slane %v312, 1
  %v325 = vsel %vm192, %v323, %v324
  %v326 = vrot.slane %v313, 1
  %v327 = vsel %vm192, %v324, %v326
  %v328 = vrot.slane %v314, 1
  %v329 = vrot.slane %v315, 1
  %v330 = vsel %vm192, %v328, %v329
  %v331 = vrot.slane %v316, 1
  %v332 = vsel %vm192, %v329, %v331
  %333 = vrot.lane.b32.xlu0 %v325, 116
  %v334 = vpop.permute.xlu0 %333
  %335 = vrot.lane.b32.xlu0 %v327, 116
  %v336 = vpop.permute.xlu0 %335
  %337 = vrot.lane.b32.xlu0 %v330, 116
  %v338 = vpop.permute.xlu0 %337
  %339 = vrot.lane.b32.xlu0 %v332, 116
  %v340 = vpop.permute.xlu0 %339
  %v345 = vadd.f32 %v299, %v334
  %v346 = vadd.f32 %v300, %v336
  %v347 = vadd.f32 %v301, %v338
  %v348 = vadd.f32 %v302, %v340
  %v349 = vlaneseq
  %v350 = vshrl.u32 %v349, 7
  %v351 = vsub.s32 1, %v350
  %v352 = vrot.slane %v33, %v351
  %354 = vrot.lane.b32.xlu0 %v352, 16
  %v355 = vpop.permute.xlu0 %354
  %v357 = vmul.f32 %v26, %v355
  %v358 = vmul.f32 %v27, %v355
  %v359 = vmul.f32 %v28, %v355
  %v360 = vmul.f32 %v29, %v355
  %v361 = vmul.f32 %v30, %v355
  %v362 = vmul.f32 %v31, %v355
  %v369 = vrot.slane %v357, 1
  %v370 = vrot.slane %v358, 1
  %v371 = vsel %vm192, %v369, %v370
  %v372 = vrot.slane %v359, 1
  %v373 = vsel %vm192, %v370, %v372
  %v374 = vrot.slane %v360, 1
  %v375 = vrot.slane %v361, 1
  %v376 = vsel %vm192, %v374, %v375
  %v377 = vrot.slane %v362, 1
  %v378 = vsel %vm192, %v375, %v377
  %379 = vrot.lane.b32.xlu0 %v371, 112
  %v380 = vpop.permute.xlu0 %379
  %381 = vrot.lane.b32.xlu0 %v373, 112
  %v382 = vpop.permute.xlu0 %381
  %383 = vrot.lane.b32.xlu0 %v376, 112
  %v384 = vpop.permute.xlu0 %383
  %385 = vrot.lane.b32.xlu0 %v378, 112
  %v386 = vpop.permute.xlu0 %385
  %v391 = vadd.f32 %v345, %v380
  %v392 = vadd.f32 %v346, %v382
  %v393 = vadd.f32 %v347, %v384
  %v394 = vadd.f32 %v348, %v386
  %v395 = vlaneseq
  %v396 = vshrl.u32 %v395, 7
  %v397 = vsub.s32 2, %v396
  %v398 = vrot.slane %v33, %v397
  %v399 = vmul.f32 %v26, %v398
  %v400 = vmul.f32 %v27, %v398
  %v401 = vmul.f32 %v28, %v398
  %v402 = vmul.f32 %v29, %v398
  %v403 = vmul.f32 %v30, %v398
  %v404 = vmul.f32 %v31, %v398
  %vm411 = vcmask 1045504
  %v412 = vrot.slane %v399, 2
  %v413 = vrot.slane %v400, 2
  %v414 = vsel %vm411, %v412, %v413
  %v415 = vrot.slane %v401, 2
  %v416 = vsel %vm411, %v413, %v415
  %v417 = vrot.slane %v402, 2
  %v418 = vrot.slane %v403, 2
  %v419 = vsel %vm411, %v417, %v418
  %v420 = vrot.slane %v404, 2
  %v421 = vsel %vm411, %v418, %v420
  %v426 = vadd.f32 %v391, %v414
  %v427 = vadd.f32 %v392, %v416
  %v428 = vadd.f32 %v393, %v419
  %v429 = vadd.f32 %v394, %v421
  %v430 = vlaneseq
  %v431 = vshrl.u32 %v430, 7
  %v432 = vsub.s32 3, %v431
  %v433 = vrot.slane %v33, %v432
  %435 = vrot.lane.b32.xlu0 %v433, 4
  %v436 = vpop.permute.xlu0 %435
  %v438 = vmul.f32 %v26, %v436
  %v439 = vmul.f32 %v27, %v436
  %v440 = vmul.f32 %v28, %v436
  %v441 = vmul.f32 %v29, %v436
  %v442 = vmul.f32 %v30, %v436
  %v443 = vmul.f32 %v31, %v436
  %v450 = vrot.slane %v438, 2
  %v451 = vrot.slane %v439, 2
  %v452 = vsel %vm411, %v450, %v451
  %v453 = vrot.slane %v440, 2
  %v454 = vsel %vm411, %v451, %v453
  %v455 = vrot.slane %v441, 2
  %v456 = vrot.slane %v442, 2
  %v457 = vsel %vm411, %v455, %v456
  %v458 = vrot.slane %v443, 2
  %v459 = vsel %vm411, %v456, %v458
  %460 = vrot.lane.b32.xlu0 %v452, 124
  %v461 = vpop.permute.xlu0 %460
  %462 = vrot.lane.b32.xlu0 %v454, 124
  %v463 = vpop.permute.xlu0 %462
  %464 = vrot.lane.b32.xlu0 %v457, 124
  %v465 = vpop.permute.xlu0 %464
  %466 = vrot.lane.b32.xlu0 %v459, 124
  %v467 = vpop.permute.xlu0 %466
  %v472 = vadd.f32 %v426, %v461
  %v473 = vadd.f32 %v427, %v463
  %v474 = vadd.f32 %v428, %v465
  %v475 = vadd.f32 %v429, %v467
  %v476 = vlaneseq
  %v477 = vshrl.u32 %v476, 7
  %v478 = vsub.s32 4, %v477
  %v479 = vrot.slane %v33, %v478
  %481 = vrot.lane.b32.xlu0 %v479, 8
  %v482 = vpop.permute.xlu0 %481
  %v484 = vmul.f32 %v26, %v482
  %v485 = vmul.f32 %v27, %v482
  %v486 = vmul.f32 %v28, %v482
  %v487 = vmul.f32 %v29, %v482
  %v488 = vmul.f32 %v30, %v482
  %v489 = vmul.f32 %v31, %v482
  %v496 = vrot.slane %v484, 2
  %v497 = vrot.slane %v485, 2
  %v498 = vsel %vm411, %v496, %v497
  %v499 = vrot.slane %v486, 2
  %v500 = vsel %vm411, %v497, %v499
  %v501 = vrot.slane %v487, 2
  %v502 = vrot.slane %v488, 2
  %v503 = vsel %vm411, %v501, %v502
  %v504 = vrot.slane %v489, 2
  %v505 = vsel %vm411, %v502, %v504
  %506 = vrot.lane.b32.xlu0 %v498, 120
  %v507 = vpop.permute.xlu0 %506
  %508 = vrot.lane.b32.xlu0 %v500, 120
  %v509 = vpop.permute.xlu0 %508
  %510 = vrot.lane.b32.xlu0 %v503, 120
  %v511 = vpop.permute.xlu0 %510
  %512 = vrot.lane.b32.xlu0 %v505, 120
  %v513 = vpop.permute.xlu0 %512
  %v518 = vadd.f32 %v472, %v507
  %v519 = vadd.f32 %v473, %v509
  %v520 = vadd.f32 %v474, %v511
  %v521 = vadd.f32 %v475, %v513
  %v522 = vlaneseq
  %v523 = vshrl.u32 %v522, 7
  %v524 = vsub.s32 5, %v523
  %v525 = vrot.slane %v33, %v524
  %527 = vrot.lane.b32.xlu0 %v525, 12
  %v528 = vpop.permute.xlu0 %527
  %v530 = vmul.f32 %v26, %v528
  %v531 = vmul.f32 %v27, %v528
  %v532 = vmul.f32 %v28, %v528
  %v533 = vmul.f32 %v29, %v528
  %v534 = vmul.f32 %v30, %v528
  %v535 = vmul.f32 %v31, %v528
  %v542 = vrot.slane %v530, 2
  %v543 = vrot.slane %v531, 2
  %v544 = vsel %vm411, %v542, %v543
  %v545 = vrot.slane %v532, 2
  %v546 = vsel %vm411, %v543, %v545
  %v547 = vrot.slane %v533, 2
  %v548 = vrot.slane %v534, 2
  %v549 = vsel %vm411, %v547, %v548
  %v550 = vrot.slane %v535, 2
  %v551 = vsel %vm411, %v548, %v550
  %552 = vrot.lane.b32.xlu0 %v544, 116
  %v553 = vpop.permute.xlu0 %552
  %554 = vrot.lane.b32.xlu0 %v546, 116
  %v555 = vpop.permute.xlu0 %554
  %556 = vrot.lane.b32.xlu0 %v549, 116
  %v557 = vpop.permute.xlu0 %556
  %558 = vrot.lane.b32.xlu0 %v551, 116
  %v559 = vpop.permute.xlu0 %558
  %v564 = vadd.f32 %v518, %v553
  %v565 = vadd.f32 %v519, %v555
  %v566 = vadd.f32 %v520, %v557
  %v567 = vadd.f32 %v521, %v559
  %v568 = vlaneseq
  %v569 = vshrl.u32 %v568, 7
  %v570 = vsub.s32 6, %v569
  %v571 = vrot.slane %v33, %v570
  %573 = vrot.lane.b32.xlu0 %v571, 16
  %v574 = vpop.permute.xlu0 %573
  %v576 = vmul.f32 %v26, %v574
  %v577 = vmul.f32 %v27, %v574
  %v578 = vmul.f32 %v28, %v574
  %v579 = vmul.f32 %v29, %v574
  %v580 = vmul.f32 %v30, %v574
  %v581 = vmul.f32 %v31, %v574
  %v588 = vrot.slane %v576, 2
  %v589 = vrot.slane %v577, 2
  %v590 = vsel %vm411, %v588, %v589
  %v591 = vrot.slane %v578, 2
  %v592 = vsel %vm411, %v589, %v591
  %v593 = vrot.slane %v579, 2
  %v594 = vrot.slane %v580, 2
  %v595 = vsel %vm411, %v593, %v594
  %v596 = vrot.slane %v581, 2
  %v597 = vsel %vm411, %v594, %v596
  %598 = vrot.lane.b32.xlu0 %v590, 112
  %v599 = vpop.permute.xlu0 %598
  %600 = vrot.lane.b32.xlu0 %v592, 112
  %v601 = vpop.permute.xlu0 %600
  %602 = vrot.lane.b32.xlu0 %v595, 112
  %v603 = vpop.permute.xlu0 %602
  %604 = vrot.lane.b32.xlu0 %v597, 112
  %v605 = vpop.permute.xlu0 %604
  %v610 = vadd.f32 %v564, %v599
  %v611 = vadd.f32 %v565, %v601
  %v612 = vadd.f32 %v566, %v603
  %v613 = vadd.f32 %v567, %v605
  %v614 = vlaneseq
  %v615 = vshrl.u32 %v614, 7
  %v616 = vsub.s32 7, %v615
  %v617 = vrot.slane %v33, %v616
  %v618 = vmul.f32 %v26, %v617
  %v619 = vmul.f32 %v27, %v617
  %v620 = vmul.f32 %v28, %v617
  %v621 = vmul.f32 %v29, %v617
  %v622 = vmul.f32 %v30, %v617
  %v623 = vmul.f32 %v31, %v617
  %vm630 = vcmask 1044480
  %v631 = vrot.slane %v618, 3
  %v632 = vrot.slane %v619, 3
  %v633 = vsel %vm630, %v631, %v632
  %v634 = vrot.slane %v620, 3
  %v635 = vsel %vm630, %v632, %v634
  %v636 = vrot.slane %v621, 3
  %v637 = vrot.slane %v622, 3
  %v638 = vsel %vm630, %v636, %v637
  %v639 = vrot.slane %v623, 3
  %v640 = vsel %vm630, %v637, %v639
  %v645 = vadd.f32 %v610, %v633
  %v646 = vadd.f32 %v611, %v635
  %v647 = vadd.f32 %v612, %v638
  %v648 = vadd.f32 %v613, %v640
  %v649 = vlaneseq
  %v650 = vshrl.u32 %v649, 7
  %v651 = vsub.s32 0, %v650
  %v652 = vrot.slane %v34, %v651
  %654 = vrot.lane.b32.xlu0 %v652, 4
  %v655 = vpop.permute.xlu0 %654
  %v657 = vmul.f32 %v26, %v655
  %v658 = vmul.f32 %v27, %v655
  %v659 = vmul.f32 %v28, %v655
  %v660 = vmul.f32 %v29, %v655
  %v661 = vmul.f32 %v30, %v655
  %v662 = vmul.f32 %v31, %v655
  %v669 = vrot.slane %v657, 3
  %v670 = vrot.slane %v658, 3
  %v671 = vsel %vm630, %v669, %v670
  %v672 = vrot.slane %v659, 3
  %v673 = vsel %vm630, %v670, %v672
  %v674 = vrot.slane %v660, 3
  %v675 = vrot.slane %v661, 3
  %v676 = vsel %vm630, %v674, %v675
  %v677 = vrot.slane %v662, 3
  %v678 = vsel %vm630, %v675, %v677
  %679 = vrot.lane.b32.xlu0 %v671, 124
  %v680 = vpop.permute.xlu0 %679
  %681 = vrot.lane.b32.xlu0 %v673, 124
  %v682 = vpop.permute.xlu0 %681
  %683 = vrot.lane.b32.xlu0 %v676, 124
  %v684 = vpop.permute.xlu0 %683
  %685 = vrot.lane.b32.xlu0 %v678, 124
  %v686 = vpop.permute.xlu0 %685
  %v691 = vadd.f32 %v645, %v680
  %v692 = vadd.f32 %v646, %v682
  %v693 = vadd.f32 %v647, %v684
  %v694 = vadd.f32 %v648, %v686
  %v695 = vlaneseq
  %v696 = vshrl.u32 %v695, 7
  %v697 = vsub.s32 1, %v696
  %v698 = vrot.slane %v34, %v697
  %700 = vrot.lane.b32.xlu0 %v698, 8
  %v701 = vpop.permute.xlu0 %700
  %v703 = vmul.f32 %v26, %v701
  %v704 = vmul.f32 %v27, %v701
  %v705 = vmul.f32 %v28, %v701
  %v706 = vmul.f32 %v29, %v701
  %v707 = vmul.f32 %v30, %v701
  %v708 = vmul.f32 %v31, %v701
  %v715 = vrot.slane %v703, 3
  %v716 = vrot.slane %v704, 3
  %v717 = vsel %vm630, %v715, %v716
  %v718 = vrot.slane %v705, 3
  %v719 = vsel %vm630, %v716, %v718
  %v720 = vrot.slane %v706, 3
  %v721 = vrot.slane %v707, 3
  %v722 = vsel %vm630, %v720, %v721
  %v723 = vrot.slane %v708, 3
  %v724 = vsel %vm630, %v721, %v723
  %725 = vrot.lane.b32.xlu0 %v717, 120
  %v726 = vpop.permute.xlu0 %725
  %727 = vrot.lane.b32.xlu0 %v719, 120
  %v728 = vpop.permute.xlu0 %727
  %729 = vrot.lane.b32.xlu0 %v722, 120
  %v730 = vpop.permute.xlu0 %729
  %731 = vrot.lane.b32.xlu0 %v724, 120
  %v732 = vpop.permute.xlu0 %731
  %v737 = vadd.f32 %v691, %v726
  %v738 = vadd.f32 %v692, %v728
  %v739 = vadd.f32 %v693, %v730
  %v740 = vadd.f32 %v694, %v732
  %v741 = vlaneseq
  %v742 = vshrl.u32 %v741, 7
  %v743 = vsub.s32 2, %v742
  %v744 = vrot.slane %v34, %v743
  %746 = vrot.lane.b32.xlu0 %v744, 12
  %v747 = vpop.permute.xlu0 %746
  %v749 = vmul.f32 %v26, %v747
  %v750 = vmul.f32 %v27, %v747
  %v751 = vmul.f32 %v28, %v747
  %v752 = vmul.f32 %v29, %v747
  %v753 = vmul.f32 %v30, %v747
  %v754 = vmul.f32 %v31, %v747
  %v761 = vrot.slane %v749, 3
  %v762 = vrot.slane %v750, 3
  %v763 = vsel %vm630, %v761, %v762
  %v764 = vrot.slane %v751, 3
  %v765 = vsel %vm630, %v762, %v764
  %v766 = vrot.slane %v752, 3
  %v767 = vrot.slane %v753, 3
  %v768 = vsel %vm630, %v766, %v767
  %v769 = vrot.slane %v754, 3
  %v770 = vsel %vm630, %v767, %v769
  %771 = vrot.lane.b32.xlu0 %v763, 116
  %v772 = vpop.permute.xlu0 %771
  %773 = vrot.lane.b32.xlu0 %v765, 116
  %v774 = vpop.permute.xlu0 %773
  %775 = vrot.lane.b32.xlu0 %v768, 116
  %v776 = vpop.permute.xlu0 %775
  %777 = vrot.lane.b32.xlu0 %v770, 116
  %v778 = vpop.permute.xlu0 %777
  %v783 = vadd.f32 %v737, %v772
  %v784 = vadd.f32 %v738, %v774
  %v785 = vadd.f32 %v739, %v776
  %v786 = vadd.f32 %v740, %v778
  %v787 = vlaneseq
  %v788 = vshrl.u32 %v787, 7
  %v789 = vsub.s32 3, %v788
  %v790 = vrot.slane %v34, %v789
  %792 = vrot.lane.b32.xlu0 %v790, 16
  %v793 = vpop.permute.xlu0 %792
  %v795 = vmul.f32 %v26, %v793
  %v796 = vmul.f32 %v27, %v793
  %v797 = vmul.f32 %v28, %v793
  %v798 = vmul.f32 %v29, %v793
  %v799 = vmul.f32 %v30, %v793
  %v800 = vmul.f32 %v31, %v793
  %v807 = vrot.slane %v795, 3
  %v808 = vrot.slane %v796, 3
  %v809 = vsel %vm630, %v807, %v808
  %v810 = vrot.slane %v797, 3
  %v811 = vsel %vm630, %v808, %v810
  %v812 = vrot.slane %v798, 3
  %v813 = vrot.slane %v799, 3
  %v814 = vsel %vm630, %v812, %v813
  %v815 = vrot.slane %v800, 3
  %v816 = vsel %vm630, %v813, %v815
  %817 = vrot.lane.b32.xlu0 %v809, 112
  %v818 = vpop.permute.xlu0 %817
  %819 = vrot.lane.b32.xlu0 %v811, 112
  %v820 = vpop.permute.xlu0 %819
  %821 = vrot.lane.b32.xlu0 %v814, 112
  %v822 = vpop.permute.xlu0 %821
  %823 = vrot.lane.b32.xlu0 %v816, 112
  %v824 = vpop.permute.xlu0 %823
  %v829 = vadd.f32 %v783, %v818
  %v830 = vadd.f32 %v784, %v820
  %v831 = vadd.f32 %v785, %v822
  %v832 = vadd.f32 %v786, %v824
  %v833 = vlaneseq
  %v834 = vshrl.u32 %v833, 7
  %v835 = vsub.s32 4, %v834
  %v836 = vrot.slane %v34, %v835
  %v837 = vmul.f32 %v26, %v836
  %v838 = vmul.f32 %v27, %v836
  %v839 = vmul.f32 %v28, %v836
  %v840 = vmul.f32 %v29, %v836
  %v841 = vmul.f32 %v30, %v836
  %v842 = vmul.f32 %v31, %v836
  %vm849 = vcmask 1043456
  %v850 = vrot.slane %v837, 4
  %v851 = vrot.slane %v838, 4
  %v852 = vsel %vm849, %v850, %v851
  %v853 = vrot.slane %v839, 4
  %v854 = vsel %vm849, %v851, %v853
  %v855 = vrot.slane %v840, 4
  %v856 = vrot.slane %v841, 4
  %v857 = vsel %vm849, %v855, %v856
  %v858 = vrot.slane %v842, 4
  %v859 = vsel %vm849, %v856, %v858
  %v864 = vadd.f32 %v829, %v852
  %v865 = vadd.f32 %v830, %v854
  %v866 = vadd.f32 %v831, %v857
  %v867 = vadd.f32 %v832, %v859
  %v868 = vlaneseq
  %v869 = vshrl.u32 %v868, 7
  %v870 = vsub.s32 5, %v869
  %v871 = vrot.slane %v34, %v870
  %873 = vrot.lane.b32.xlu0 %v871, 4
  %v874 = vpop.permute.xlu0 %873
  %v876 = vmul.f32 %v26, %v874
  %v877 = vmul.f32 %v27, %v874
  %v878 = vmul.f32 %v28, %v874
  %v879 = vmul.f32 %v29, %v874
  %v880 = vmul.f32 %v30, %v874
  %v881 = vmul.f32 %v31, %v874
  %v888 = vrot.slane %v876, 4
  %v889 = vrot.slane %v877, 4
  %v890 = vsel %vm849, %v888, %v889
  %v891 = vrot.slane %v878, 4
  %v892 = vsel %vm849, %v889, %v891
  %v893 = vrot.slane %v879, 4
  %v894 = vrot.slane %v880, 4
  %v895 = vsel %vm849, %v893, %v894
  %v896 = vrot.slane %v881, 4
  %v897 = vsel %vm849, %v894, %v896
  %898 = vrot.lane.b32.xlu0 %v890, 124
  %v899 = vpop.permute.xlu0 %898
  %900 = vrot.lane.b32.xlu0 %v892, 124
  %v901 = vpop.permute.xlu0 %900
  %902 = vrot.lane.b32.xlu0 %v895, 124
  %v903 = vpop.permute.xlu0 %902
  %904 = vrot.lane.b32.xlu0 %v897, 124
  %v905 = vpop.permute.xlu0 %904
  %v910 = vadd.f32 %v864, %v899
  %v911 = vadd.f32 %v865, %v901
  %v912 = vadd.f32 %v866, %v903
  %v913 = vadd.f32 %v867, %v905
  %v914 = vlaneseq
  %v915 = vshrl.u32 %v914, 7
  %v916 = vsub.s32 6, %v915
  %v917 = vrot.slane %v34, %v916
  %919 = vrot.lane.b32.xlu0 %v917, 8
  %v920 = vpop.permute.xlu0 %919
  %v922 = vmul.f32 %v26, %v920
  %v923 = vmul.f32 %v27, %v920
  %v924 = vmul.f32 %v28, %v920
  %v925 = vmul.f32 %v29, %v920
  %v926 = vmul.f32 %v30, %v920
  %v927 = vmul.f32 %v31, %v920
  %v934 = vrot.slane %v922, 4
  %v935 = vrot.slane %v923, 4
  %v936 = vsel %vm849, %v934, %v935
  %v937 = vrot.slane %v924, 4
  %v938 = vsel %vm849, %v935, %v937
  %v939 = vrot.slane %v925, 4
  %v940 = vrot.slane %v926, 4
  %v941 = vsel %vm849, %v939, %v940
  %v942 = vrot.slane %v927, 4
  %v943 = vsel %vm849, %v940, %v942
  %944 = vrot.lane.b32.xlu0 %v936, 120
  %v945 = vpop.permute.xlu0 %944
  %946 = vrot.lane.b32.xlu0 %v938, 120
  %v947 = vpop.permute.xlu0 %946
  %948 = vrot.lane.b32.xlu0 %v941, 120
  %v949 = vpop.permute.xlu0 %948
  %950 = vrot.lane.b32.xlu0 %v943, 120
  %v951 = vpop.permute.xlu0 %950
  %v956 = vadd.f32 %v910, %v945
  %v957 = vadd.f32 %v911, %v947
  %v958 = vadd.f32 %v912, %v949
  %v959 = vadd.f32 %v913, %v951
  %v960 = vlaneseq
  %v961 = vshrl.u32 %v960, 7
  %v962 = vsub.s32 7, %v961
  %v963 = vrot.slane %v34, %v962
  %965 = vrot.lane.b32.xlu0 %v963, 12
  %v966 = vpop.permute.xlu0 %965
  %v968 = vmul.f32 %v26, %v966
  %v969 = vmul.f32 %v27, %v966
  %v970 = vmul.f32 %v28, %v966
  %v971 = vmul.f32 %v29, %v966
  %v972 = vmul.f32 %v30, %v966
  %v973 = vmul.f32 %v31, %v966
  %v980 = vrot.slane %v968, 4
  %v981 = vrot.slane %v969, 4
  %v982 = vsel %vm849, %v980, %v981
  %v983 = vrot.slane %v970, 4
  %v984 = vsel %vm849, %v981, %v983
  %v985 = vrot.slane %v971, 4
  %v986 = vrot.slane %v972, 4
  %v987 = vsel %vm849, %v985, %v986
  %v988 = vrot.slane %v973, 4
  %v989 = vsel %vm849, %v986, %v988
  %990 = vrot.lane.b32.xlu0 %v982, 116
  %v991 = vpop.permute.xlu0 %990
  %992 = vrot.lane.b32.xlu0 %v984, 116
  %v993 = vpop.permute.xlu0 %992
  %994 = vrot.lane.b32.xlu0 %v987, 116
  %v995 = vpop.permute.xlu0 %994
  %996 = vrot.lane.b32.xlu0 %v989, 116
  %v997 = vpop.permute.xlu0 %996
  %v1002 = vadd.f32 %v956, %v991
  %v1003 = vadd.f32 %v957, %v993
  %v1004 = vadd.f32 %v958, %v995
  %v1005 = vadd.f32 %v959, %v997
  %v1006 = vlaneseq
  %v1007 = vshrl.u32 %v1006, 7
  %v1008 = vsub.s32 0, %v1007
  %v1009 = vrot.slane %v35, %v1008
  %1011 = vrot.lane.b32.xlu0 %v1009, 16
  %v1012 = vpop.permute.xlu0 %1011
  %v1014 = vmul.f32 %v26, %v1012
  %v1015 = vmul.f32 %v27, %v1012
  %v1016 = vmul.f32 %v28, %v1012
  %v1017 = vmul.f32 %v29, %v1012
  %v1018 = vmul.f32 %v30, %v1012
  %v1019 = vmul.f32 %v31, %v1012
  %v1026 = vrot.slane %v1014, 4
  %v1027 = vrot.slane %v1015, 4
  %v1028 = vsel %vm849, %v1026, %v1027
  %v1029 = vrot.slane %v1016, 4
  %v1030 = vsel %vm849, %v1027, %v1029
  %v1031 = vrot.slane %v1017, 4
  %v1032 = vrot.slane %v1018, 4
  %v1033 = vsel %vm849, %v1031, %v1032
  %v1034 = vrot.slane %v1019, 4
  %v1035 = vsel %vm849, %v1032, %v1034
  %1036 = vrot.lane.b32.xlu0 %v1028, 112
  %v1037 = vpop.permute.xlu0 %1036
  %1038 = vrot.lane.b32.xlu0 %v1030, 112
  %v1039 = vpop.permute.xlu0 %1038
  %1040 = vrot.lane.b32.xlu0 %v1033, 112
  %v1041 = vpop.permute.xlu0 %1040
  %1042 = vrot.lane.b32.xlu0 %v1035, 112
  %v1043 = vpop.permute.xlu0 %1042
  %v1048 = vadd.f32 %v1002, %v1037
  %v1049 = vadd.f32 %v1003, %v1039
  %v1050 = vadd.f32 %v1004, %v1041
  %v1051 = vadd.f32 %v1005, %v1043
  %v1052 = vld [vmem:[%s2] sm:$0xff]
  %v1053 = vld [vmem:[%s2 + $0x8] sm:$0xff]
  %v1054 = vld [vmem:[%s2 + $0x10] sm:$0xff]
  %v1055 = vld [vmem:[%s2 + $0x18] sm:$0xff]
  %v1056 = vld [vmem:[%s2 + $0x20] sm:$0xff]
  %v1057 = vld [vmem:[%s2 + $0x28] sm:$0xff]
  %v1058 = vld [vmem:[%s2 + $0x30] sm:$0xff]
  %v1059 = vld [vmem:[%s2 + $0x38] sm:$0xff]
  %v1060 = vld [vmem:[%s3] sm:$0x1]
  %v1062 = vlaneseq
  %v1063 = vshrl.u32 %v1062, 7
  %v1064 = vsub.s32 0, %v1063
  %v1065 = vrot.slane %v1060, %v1064
  %vm1067 = vcmask 523264
  %v1069 = vsel %vm1067, %v1048, 0
  %v1072 = vsel %vm1067, %v1049, 0
  %v1075 = vsel %vm1067, %v1050, 0
  %v1078 = vsel %vm1067, %v1051, 0
  %1080 = vmatprep.subr.mxu0 0.0
  %1081 = vmatpush1.msra.mxu0 0.0
  %1082 = vmatprep.subr.mxu0 0.0
  %1083 = vmatpush1.msra.mxu0 0.0
  %1084 = vmatprep.subr.mxu0 0.0
  %1085 = vmatpush1.msra.mxu0 0.0
  %1086 = vmatprep.subr.mxu0 0.0
  %1087 = vmatpush1.msra.mxu0 0.0
  %1088 = vmatprep.subr.mxu0 0.0
  %1089 = vmatpush1.msra.mxu0 0.0
  %1090 = vmatprep.subr.mxu0 0.0
  %1091 = vmatpush1.msra.mxu0 0.0
  %1092 = vmatprep.subr.mxu0 0.0
  %1093 = vmatpush1.msra.mxu0 0.0
  %1094 = vmatprep.subr.mxu0 0.0
  %1095 = vmatpush1.msra.mxu0 0.0
  %1096 = vmatprep.subr.mxu0 0.0
  %1097 = vmatpush1.msra.mxu0 %v1059
  %1098 = vmatprep.subr.mxu0 0.0
  %1099 = vmatpush1.msra.mxu0 %v1058
  %1100 = vmatprep.subr.mxu0 0.0
  %1101 = vmatpush1.msra.mxu0 %v1057
  %1102 = vmatprep.subr.mxu0 0.0
  %1103 = vmatpush1.msra.mxu0 %v1056
  %1104 = vmatprep.subr.mxu0 0.0
  %1105 = vmatpush1.msra.mxu0 %v1055
  %1106 = vmatprep.subr.mxu0 0.0
  %1107 = vmatpush1.msra.mxu0 %v1054
  %1108 = vmatprep.subr.mxu0 0.0
  %1109 = vmatpush1.msra.mxu0 %v1053
  %1110 = vmatprep.subr.mxu0 0.0
  %1111 = vmatpush1.msra.mxu0 %v1052
  %1112 = vmatprep.subr.mxu0 0.0
  %1113 = vmatpush2.msra.mxu0 0.0
  %1114 = vmatprep.subr.mxu0 0.0
  %1115 = vmatpush2.msra.mxu0 0.0
  %1116 = vmatprep.subr.mxu0 0.0
  %1117 = vmatpush2.msra.mxu0 0.0
  %1118 = vmatprep.subr.mxu0 0.0
  %1119 = vmatpush2.msra.mxu0 0.0
  %1120 = vmatprep.subr.mxu0 0.0
  %1121 = vmatpush2.msra.mxu0 0.0
  %1122 = vmatprep.subr.mxu0 0.0
  %1123 = vmatpush2.msra.mxu0 0.0
  %1124 = vmatprep.subr.mxu0 0.0
  %1125 = vmatpush2.msra.mxu0 0.0
  %1126 = vmatprep.subr.mxu0 0.0
  %1127 = vmatpush2.msra.mxu0 0.0
  %1128 = vmatprep.subr.mxu0 0.0
  %1129 = vmatpush2.msra.mxu0 0.0
  %1130 = vmatprep.subr.mxu0 0.0
  %1131 = vmatpush2.msra.mxu0 0.0
  %1132 = vmatprep.subr.mxu0 0.0
  %1133 = vmatpush2.msra.mxu0 0.0
  %1134 = vmatprep.subr.mxu0 0.0
  %1135 = vmatpush2.msra.mxu0 0.0
  %1136 = vmatprep.subr.mxu0 0.0
  %1137 = vmatpush2.msra.mxu0 0.0
  %1138 = vmatprep.subr.mxu0 0.0
  %1139 = vmatpush2.msra.mxu0 0.0
  %1140 = vmatprep.subr.mxu0 0.0
  %1141 = vmatpush2.msra.mxu0 0.0
  %1142 = vmatprep.subr.mxu0 0.0
  %1143 = vmatpush2.msra.mxu0 0.0
  %1144 = vmatprep.mubr.f32.mxu0 0.0
  %1145 = vmatmul.mubr.f32.gmra.mxu0 %v1069
  %v1146 = vpop.f32.mrf.mxu0
  %v1147 = vadd.f32 %v1065, %v1146
  %v1148 = vpop.f32.mrf.mxu0
  %1149 = vmatprep.mubr.f32.mxu0 0.0
  %1150 = vmatmul.mubr.f32.gmra.mxu0 %v1072
  %v1151 = vpop.f32.mrf.mxu0
  %v1152 = vadd.f32 %v1065, %v1151
  %v1153 = vpop.f32.mrf.mxu0
  %1154 = vmatprep.mubr.f32.mxu0 0.0
  %1155 = vmatmul.mubr.f32.gmra.mxu0 %v1075
  %v1156 = vpop.f32.mrf.mxu0
  %v1157 = vadd.f32 %v1065, %v1156
  %v1158 = vpop.f32.mrf.mxu0
  %1159 = vmatprep.mubr.f32.mxu0 0.0
  %1160 = vmatmul.mubr.f32.gmra.mxu0 %v1078
  %v1161 = vpop.f32.mrf.mxu0
  %v1162 = vadd.f32 %v1065, %v1161
  %v1163 = vpop.f32.mrf.mxu0
  %1164 = vdwg.mxu0
  %v1165 = vmax.f32 %v1147, 0.0
  %v1166 = vmax.f32 %v1152, 0.0
  %v1167 = vmax.f32 %v1157, 0.0
  %v1168 = vmax.f32 %v1162, 0.0
  %vm1169 = vcmask 654336
  %1170 = vst.msk [vmem:[#allocation2] sm:$0xff] %vm1169, 0.0
  %1171 = vst.msk [vmem:[#allocation2 + $0x8] sm:$0xff] %vm1169, 0.0
  %vm1172 = vcmask 650240
  %1173 = vst.msk [vmem:[#allocation2 + $0x10] sm:$0xf] %vm1172, 0.0
  %1174 = vst.msk [vmem:[#allocation2 + $0x18] sm:$0xff] %vm1169, 0.0
  %1175 = vst.msk [vmem:[#allocation2 + $0x20] sm:$0xff] %vm1169, 0.0
  %1176 = vst.msk [vmem:[#allocation2 + $0x28] sm:$0xf] %vm1172, 0.0
  %1181 = vrot.lane.b32.xlu0 %v1165, 8
  %v1182 = vpop.permute.xlu0 %1181
  %1183 = vrot.lane.b32.xlu0 %v1166, 8
  %v1184 = vpop.permute.xlu0 %1183
  %1185 = vrot.lane.b32.xlu0 %v1167, 8
  %v1186 = vpop.permute.xlu0 %1185
  %1187 = vrot.lane.b32.xlu0 %v1168, 8
  %v1188 = vpop.permute.xlu0 %1187
  %vm1193 = vcmask 588864
  %1194 = vst.msk [vmem:[#allocation2 + $0x2] sm:$0xff] %vm1193, %v1182
  %1195 = vst.msk [vmem:[#allocation2 + $0xa] sm:$0xff] %vm1193, %v1184
  %1196 = vst.msk [vmem:[#allocation2 + $0x1a] sm:$0xff] %vm1193, %v1186
  %1197 = vst.msk [vmem:[#allocation2 + $0x22] sm:$0xff] %vm1193, %v1188
  %v1204 = vrot.slane %v26, 2
  %v1205 = vrot.slane %v27, 2
  %v1206 = vsel %vm411, %v1204, %v1205
  %v1207 = vrot.slane %v28, 2
  %v1208 = vsel %vm411, %v1205, %v1207
  %v1209 = vrot.slane %v29, 2
  %v1210 = vrot.slane %v30, 2
  %v1211 = vsel %vm411, %v1209, %v1210
  %v1212 = vrot.slane %v31, 2
  %v1213 = vsel %vm411, %v1210, %v1212
  %v1214 = vld [vmem:[%s5] sm:$0xff]
  %v1215 = vld [vmem:[%s5 + $0x8] sm:$0xff]
  %v1216 = vld [vmem:[%s5 + $0x10] sm:$0xff]
  %v1217 = vld [vmem:[%s5 + $0x18] sm:$0xff]
  %v1218 = vld [vmem:[%s5 + $0x20] sm:$0xff]
  %v1219 = vld [vmem:[%s5 + $0x28] sm:$0xff]
  %v1220 = vld [vmem:[%s5 + $0x30] sm:$0xff]
  %v1221 = vld [vmem:[%s5 + $0x38] sm:$0xff]
  %v1222 = vld [vmem:[%s6] sm:$0x1]
  %v1224 = vlaneseq
  %v1225 = vshrl.u32 %v1224, 7
  %v1226 = vsub.s32 0, %v1225
  %v1227 = vrot.slane %v1222, %v1226
  %1229 = vrot.lane.b32.xlu0 %v1206, 120
  %v1230 = vpop.permute.xlu0 %1229
  %1231 = vrot.lane.b32.xlu0 %v1208, 120
  %v1232 = vpop.permute.xlu0 %1231
  %1233 = vrot.lane.b32.xlu0 %v1211, 120
  %v1234 = vpop.permute.xlu0 %1233
  %1235 = vrot.lane.b32.xlu0 %v1213, 120
  %v1236 = vpop.permute.xlu0 %1235
  %v1237 = vsel %vm1067, %v1230, 0
  %v1239 = vsel %vm1067, %v1232, 0
  %v1241 = vsel %vm1067, %v1234, 0
  %v1243 = vsel %vm1067, %v1236, 0
  %1245 = vmatprep.subr.mxu0 0.0
  %1246 = vmatpush1.msra.mxu0 0.0
  %1247 = vmatprep.subr.mxu0 0.0
  %1248 = vmatpush1.msra.mxu0 0.0
  %1249 = vmatprep.subr.mxu0 0.0
  %1250 = vmatpush1.msra.mxu0 0.0
  %1251 = vmatprep.subr.mxu0 0.0
  %1252 = vmatpush1.msra.mxu0 0.0
  %1253 = vmatprep.subr.mxu0 0.0
  %1254 = vmatpush1.msra.mxu0 0.0
  %1255 = vmatprep.subr.mxu0 0.0
  %1256 = vmatpush1.msra.mxu0 0.0
  %1257 = vmatprep.subr.mxu0 0.0
  %1258 = vmatpush1.msra.mxu0 0.0
  %1259 = vmatprep.subr.mxu0 0.0
  %1260 = vmatpush1.msra.mxu0 0.0
  %1261 = vmatprep.subr.mxu0 0.0
  %1262 = vmatpush1.msra.mxu0 %v1221
  %1263 = vmatprep.subr.mxu0 0.0
  %1264 = vmatpush1.msra.mxu0 %v1220
  %1265 = vmatprep.subr.mxu0 0.0
  %1266 = vmatpush1.msra.mxu0 %v1219
  %1267 = vmatprep.subr.mxu0 0.0
  %1268 = vmatpush1.msra.mxu0 %v1218
  %1269 = vmatprep.subr.mxu0 0.0
  %1270 = vmatpush1.msra.mxu0 %v1217
  %1271 = vmatprep.subr.mxu0 0.0
  %1272 = vmatpush1.msra.mxu0 %v1216
  %1273 = vmatprep.subr.mxu0 0.0
  %1274 = vmatpush1.msra.mxu0 %v1215
  %1275 = vmatprep.subr.mxu0 0.0
  %1276 = vmatpush1.msra.mxu0 %v1214
  %1277 = vmatprep.subr.mxu0 0.0
  %1278 = vmatpush2.msra.mxu0 0.0
  %1279 = vmatprep.subr.mxu0 0.0
  %1280 = vmatpush2.msra.mxu0 0.0
  %1281 = vmatprep.subr.mxu0 0.0
  %1282 = vmatpush2.msra.mxu0 0.0
  %1283 = vmatprep.subr.mxu0 0.0
  %1284 = vmatpush2.msra.mxu0 0.0
  %1285 = vmatprep.subr.mxu0 0.0
  %1286 = vmatpush2.msra.mxu0 0.0
  %1287 = vmatprep.subr.mxu0 0.0
  %1288 = vmatpush2.msra.mxu0 0.0
  %1289 = vmatprep.subr.mxu0 0.0
  %1290 = vmatpush2.msra.mxu0 0.0
  %1291 = vmatprep.subr.mxu0 0.0
  %1292 = vmatpush2.msra.mxu0 0.0
  %1293 = vmatprep.subr.mxu0 0.0
  %1294 = vmatpush2.msra.mxu0 0.0
  %1295 = vmatprep.subr.mxu0 0.0
  %1296 = vmatpush2.msra.mxu0 0.0
  %1297 = vmatprep.subr.mxu0 0.0
  %1298 = vmatpush2.msra.mxu0 0.0
  %1299 = vmatprep.subr.mxu0 0.0
  %1300 = vmatpush2.msra.mxu0 0.0
  %1301 = vmatprep.subr.mxu0 0.0
  %1302 = vmatpush2.msra.mxu0 0.0
  %1303 = vmatprep.subr.mxu0 0.0
  %1304 = vmatpush2.msra.mxu0 0.0
  %1305 = vmatprep.subr.mxu0 0.0
  %1306 = vmatpush2.msra.mxu0 0.0
  %1307 = vmatprep.subr.mxu0 0.0
  %1308 = vmatpush2.msra.mxu0 0.0
  %1309 = vmatprep.mubr.f32.mxu0 0.0
  %1310 = vmatmul.mubr.f32.gmra.mxu0 %v1237
  %v1311 = vpop.f32.mrf.mxu0
  %v1312 = vadd.f32 %v1227, %v1311
  %v1313 = vpop.f32.mrf.mxu0
  %1314 = vmatprep.mubr.f32.mxu0 0.0
  %1315 = vmatmul.mubr.f32.gmra.mxu0 %v1239
  %v1316 = vpop.f32.mrf.mxu0
  %v1317 = vadd.f32 %v1227, %v1316
  %v1318 = vpop.f32.mrf.mxu0
  %1319 = vmatprep.mubr.f32.mxu0 0.0
  %1320 = vmatmul.mubr.f32.gmra.mxu0 %v1241
  %v1321 = vpop.f32.mrf.mxu0
  %v1322 = vadd.f32 %v1227, %v1321
  %v1323 = vpop.f32.mrf.mxu0
  %1324 = vmatprep.mubr.f32.mxu0 0.0
  %1325 = vmatmul.mubr.f32.gmra.mxu0 %v1243
  %v1326 = vpop.f32.mrf.mxu0
  %v1327 = vadd.f32 %v1227, %v1326
  %v1328 = vpop.f32.mrf.mxu0
  %1329 = vdwg.mxu0
  %v1330 = vld [vmem:[#allocation2] sm:$0xff]
  %v1331 = vld [vmem:[#allocation2 + $0x8] sm:$0xff]
  %v1332 = vld [vmem:[#allocation2 + $0x18] sm:$0xff]
  %v1333 = vld [vmem:[#allocation2 + $0x20] sm:$0xff]
  %v1334 = vld [vmem:[%s4] sm:$0xff]
  %v1335 = vld [vmem:[%s4 + $0x8] sm:$0xff]
  %v1336 = vld [vmem:[%s4 + $0x10] sm:$0xff]
  %v1337 = vld [vmem:[%s4 + $0x18] sm:$0xff]
  %v1338 = vld [vmem:[%s4 + $0x20] sm:$0xff]
  %v1339 = vld [vmem:[%s4 + $0x28] sm:$0xff]
  %v1340 = vld [vmem:[%s4 + $0x30] sm:$0xff]
  %v1341 = vld [vmem:[%s4 + $0x38] sm:$0xff]
  %v1342 = vld [vmem:[%s4 + $0x40] sm:$0xff]
  %v1343 = vld [vmem:[%s4 + $0x48] sm:$0xff]
  %v1345 = vsel %vm1169, %v1330, 0
  %v1348 = vsel %vm1169, %v1331, 0
  %v1351 = vsel %vm1169, %v1332, 0
  %v1354 = vsel %vm1169, %v1333, 0
  %1356 = vmatprep.subr.mxu0 0.0
  %1357 = vmatpush1.msra.mxu0 0.0
  %1358 = vmatprep.subr.mxu0 0.0
  %1359 = vmatpush1.msra.mxu0 0.0
  %1360 = vmatprep.subr.mxu0 0.0
  %1361 = vmatpush1.msra.mxu0 0.0
  %1362 = vmatprep.subr.mxu0 0.0
  %1363 = vmatpush1.msra.mxu0 0.0
  %1364 = vmatprep.subr.mxu0 0.0
  %1365 = vmatpush1.msra.mxu0 0.0
  %1366 = vmatprep.subr.mxu0 0.0
  %1367 = vmatpush1.msra.mxu0 0.0
  %1368 = vmatprep.subr.mxu0 0.0
  %1369 = vmatpush1.msra.mxu0 %v1343
  %1370 = vmatprep.subr.mxu0 0.0
  %1371 = vmatpush1.msra.mxu0 %v1342
  %1372 = vmatprep.subr.mxu0 0.0
  %1373 = vmatpush1.msra.mxu0 %v1341
  %1374 = vmatprep.subr.mxu0 0.0
  %1375 = vmatpush1.msra.mxu0 %v1340
  %1376 = vmatprep.subr.mxu0 0.0
  %1377 = vmatpush1.msra.mxu0 %v1339
  %1378 = vmatprep.subr.mxu0 0.0
  %1379 = vmatpush1.msra.mxu0 %v1338
  %1380 = vmatprep.subr.mxu0 0.0
  %1381 = vmatpush1.msra.mxu0 %v1337
  %1382 = vmatprep.subr.mxu0 0.0
  %1383 = vmatpush1.msra.mxu0 %v1336
  %1384 = vmatprep.subr.mxu0 0.0
  %1385 = vmatpush1.msra.mxu0 %v1335
  %1386 = vmatprep.subr.mxu0 0.0
  %1387 = vmatpush1.msra.mxu0 %v1334
  %1388 = vmatprep.subr.mxu0 0.0
  %1389 = vmatpush2.msra.mxu0 0.0
  %1390 = vmatprep.subr.mxu0 0.0
  %1391 = vmatpush2.msra.mxu0 0.0
  %1392 = vmatprep.subr.mxu0 0.0
  %1393 = vmatpush2.msra.mxu0 0.0
  %1394 = vmatprep.subr.mxu0 0.0
  %1395 = vmatpush2.msra.mxu0 0.0
  %1396 = vmatprep.subr.mxu0 0.0
  %1397 = vmatpush2.msra.mxu0 0.0
  %1398 = vmatprep.subr.mxu0 0.0
  %1399 = vmatpush2.msra.mxu0 0.0
  %1400 = vmatprep.subr.mxu0 0.0
  %1401 = vmatpush2.msra.mxu0 0.0
  %1402 = vmatprep.subr.mxu0 0.0
  %1403 = vmatpush2.msra.mxu0 0.0
  %1404 = vmatprep.subr.mxu0 0.0
  %1405 = vmatpush2.msra.mxu0 0.0
  %1406 = vmatprep.subr.mxu0 0.0
  %1407 = vmatpush2.msra.mxu0 0.0
  %1408 = vmatprep.subr.mxu0 0.0
  %1409 = vmatpush2.msra.mxu0 0.0
  %1410 = vmatprep.subr.mxu0 0.0
  %1411 = vmatpush2.msra.mxu0 0.0
  %1412 = vmatprep.subr.mxu0 0.0
  %1413 = vmatpush2.msra.mxu0 0.0
  %1414 = vmatprep.subr.mxu0 0.0
  %1415 = vmatpush2.msra.mxu0 0.0
  %1416 = vmatprep.subr.mxu0 0.0
  %1417 = vmatpush2.msra.mxu0 0.0
  %1418 = vmatprep.subr.mxu0 0.0
  %1419 = vmatpush2.msra.mxu0 0.0
  %1420 = vmatprep.mubr.f32.mxu0 0.0
  %1421 = vmatmul.mubr.f32.gmra.mxu0 %v1345
  %v1422 = vpop.f32.mrf.mxu0
  %v1423 = vadd.f32 0.0, %v1422
  %v1424 = vpop.f32.mrf.mxu0
  %1425 = vmatprep.mubr.f32.mxu0 0.0
  %1426 = vmatmul.mubr.f32.gmra.mxu0 %v1348
  %v1427 = vpop.f32.mrf.mxu0
  %v1428 = vadd.f32 0.0, %v1427
  %v1429 = vpop.f32.mrf.mxu0
  %1430 = vmatprep.mubr.f32.mxu0 0.0
  %1431 = vmatmul.mubr.f32.gmra.mxu0 %v1351
  %v1432 = vpop.f32.mrf.mxu0
  %v1433 = vadd.f32 0.0, %v1432
  %v1434 = vpop.f32.mrf.mxu0
  %1435 = vmatprep.mubr.f32.mxu0 0.0
  %1436 = vmatmul.mubr.f32.gmra.mxu0 %v1354
  %v1437 = vpop.f32.mrf.mxu0
  %v1438 = vadd.f32 0.0, %v1437
  %v1439 = vpop.f32.mrf.mxu0
  %1440 = vdwg.mxu0
  %v1441 = vadd.f32 %v1312, %v1423
  %v1442 = vadd.f32 %v1317, %v1428
  %v1443 = vadd.f32 %v1322, %v1433
  %v1444 = vadd.f32 %v1327, %v1438
  %v1445 = vld [vmem:[#allocation2 + $0x1] sm:$0xff]
  %v1446 = vld [vmem:[#allocation2 + $0x9] sm:$0xff]
  %v1447 = vld [vmem:[#allocation2 + $0x19] sm:$0xff]
  %v1448 = vld [vmem:[#allocation2 + $0x21] sm:$0xff]
  %s1449 = scalar_lea.vmem %s4, 80
  %v1450 = vld [vmem:[%s1449] sm:$0xff]
  %v1451 = vld [vmem:[%s1449 + $0x8] sm:$0xff]
  %v1452 = vld [vmem:[%s1449 + $0x10] sm:$0xff]
  %v1453 = vld [vmem:[%s1449 + $0x18] sm:$0xff]
  %v1454 = vld [vmem:[%s1449 + $0x20] sm:$0xff]
  %v1455 = vld [vmem:[%s1449 + $0x28] sm:$0xff]
  %v1456 = vld [vmem:[%s1449 + $0x30] sm:$0xff]
  %v1457 = vld [vmem:[%s1449 + $0x38] sm:$0xff]
  %v1458 = vld [vmem:[%s1449 + $0x40] sm:$0xff]
  %v1459 = vld [vmem:[%s1449 + $0x48] sm:$0xff]
  %v1461 = vsel %vm1169, %v1445, 0
  %v1464 = vsel %vm1169, %v1446, 0
  %v1467 = vsel %vm1169, %v1447, 0
  %v1470 = vsel %vm1169, %v1448, 0
  %1472 = vmatprep.subr.mxu0 0.0
  %1473 = vmatpush1.msra.mxu0 0.0
  %1474 = vmatprep.subr.mxu0 0.0
  %1475 = vmatpush1.msra.mxu0 0.0
  %1476 = vmatprep.subr.mxu0 0.0
  %1477 = vmatpush1.msra.mxu0 0.0
  %1478 = vmatprep.subr.mxu0 0.0
  %1479 = vmatpush1.msra.mxu0 0.0
  %1480 = vmatprep.subr.mxu0 0.0
  %1481 = vmatpush1.msra.mxu0 0.0
  %1482 = vmatprep.subr.mxu0 0.0
  %1483 = vmatpush1.msra.mxu0 0.0
  %1484 = vmatprep.subr.mxu0 0.0
  %1485 = vmatpush1.msra.mxu0 %v1459
  %1486 = vmatprep.subr.mxu0 0.0
  %1487 = vmatpush1.msra.mxu0 %v1458
  %1488 = vmatprep.subr.mxu0 0.0
  %1489 = vmatpush1.msra.mxu0 %v1457
  %1490 = vmatprep.subr.mxu0 0.0
  %1491 = vmatpush1.msra.mxu0 %v1456
  %1492 = vmatprep.subr.mxu0 0.0
  %1493 = vmatpush1.msra.mxu0 %v1455
  %1494 = vmatprep.subr.mxu0 0.0
  %1495 = vmatpush1.msra.mxu0 %v1454
  %1496 = vmatprep.subr.mxu0 0.0
  %1497 = vmatpush1.msra.mxu0 %v1453
  %1498 = vmatprep.subr.mxu0 0.0
  %1499 = vmatpush1.msra.mxu0 %v1452
  %1500 = vmatprep.subr.mxu0 0.0
  %1501 = vmatpush1.msra.mxu0 %v1451
  %1502 = vmatprep.subr.mxu0 0.0
  %1503 = vmatpush1.msra.mxu0 %v1450
  %1504 = vmatprep.subr.mxu0 0.0
  %1505 = vmatpush2.msra.mxu0 0.0
  %1506 = vmatprep.subr.mxu0 0.0
  %1507 = vmatpush2.msra.mxu0 0.0
  %1508 = vmatprep.subr.mxu0 0.0
  %1509 = vmatpush2.msra.mxu0 0.0
  %1510 = vmatprep.subr.mxu0 0.0
  %1511 = vmatpush2.msra.mxu0 0.0
  %1512 = vmatprep.subr.mxu0 0.0
  %1513 = vmatpush2.msra.mxu0 0.0
  %1514 = vmatprep.subr.mxu0 0.0
  %1515 = vmatpush2.msra.mxu0 0.0
  %1516 = vmatprep.subr.mxu0 0.0
  %1517 = vmatpush2.msra.mxu0 0.0
  %1518 = vmatprep.subr.mxu0 0.0
  %1519 = vmatpush2.msra.mxu0 0.0
  %1520 = vmatprep.subr.mxu0 0.0
  %1521 = vmatpush2.msra.mxu0 0.0
  %1522 = vmatprep.subr.mxu0 0.0
  %1523 = vmatpush2.msra.mxu0 0.0
  %1524 = vmatprep.subr.mxu0 0.0
  %1525 = vmatpush2.msra.mxu0 0.0
  %1526 = vmatprep.subr.mxu0 0.0
  %1527 = vmatpush2.msra.mxu0 0.0
  %1528 = vmatprep.subr.mxu0 0.0
  %1529 = vmatpush2.msra.mxu0 0.0
  %1530 = vmatprep.subr.mxu0 0.0
  %1531 = vmatpush2.msra.mxu0 0.0
  %1532 = vmatprep.subr.mxu0 0.0
  %1533 = vmatpush2.msra.mxu0 0.0
  %1534 = vmatprep.subr.mxu0 0.0
  %1535 = vmatpush2.msra.mxu0 0.0
  %1536 = vmatprep.mubr.f32.mxu0 0.0
  %1537 = vmatmul.mubr.f32.gmra.mxu0 %v1461
  %v1538 = vpop.f32.mrf.mxu0
  %v1539 = vadd.f32 0.0, %v1538
  %v1540 = vpop.f32.mrf.mxu0
  %1541 = vmatprep.mubr.f32.mxu0 0.0
  %1542 = vmatmul.mubr.f32.gmra.mxu0 %v1464
  %v1543 = vpop.f32.mrf.mxu0
  %v1544 = vadd.f32 0.0, %v1543
  %v1545 = vpop.f32.mrf.mxu0
  %1546 = vmatprep.mubr.f32.mxu0 0.0
  %1547 = vmatmul.mubr.f32.gmra.mxu0 %v1467
  %v1548 = vpop.f32.mrf.mxu0
  %v1549 = vadd.f32 0.0, %v1548
  %v1550 = vpop.f32.mrf.mxu0
  %1551 = vmatprep.mubr.f32.mxu0 0.0
  %1552 = vmatmul.mubr.f32.gmra.mxu0 %v1470
  %v1553 = vpop.f32.mrf.mxu0
  %v1554 = vadd.f32 0.0, %v1553
  %v1555 = vpop.f32.mrf.mxu0
  %1556 = vdwg.mxu0
  %v1557 = vadd.f32 %v1441, %v1539
  %v1558 = vadd.f32 %v1442, %v1544
  %v1559 = vadd.f32 %v1443, %v1549
  %v1560 = vadd.f32 %v1444, %v1554
  %v1561 = vld [vmem:[#allocation2 + $0x2] sm:$0xff]
  %v1562 = vld [vmem:[#allocation2 + $0xa] sm:$0xff]
  %v1563 = vld [vmem:[#allocation2 + $0x1a] sm:$0xff]
  %v1564 = vld [vmem:[#allocation2 + $0x22] sm:$0xff]
  %s1565 = scalar_lea.vmem %s4, 160
  %v1566 = vld [vmem:[%s1565] sm:$0xff]
  %v1567 = vld [vmem:[%s1565 + $0x8] sm:$0xff]
  %v1568 = vld [vmem:[%s1565 + $0x10] sm:$0xff]
  %v1569 = vld [vmem:[%s1565 + $0x18] sm:$0xff]
  %v1570 = vld [vmem:[%s1565 + $0x20] sm:$0xff]
  %v1571 = vld [vmem:[%s1565 + $0x28] sm:$0xff]
  %v1572 = vld [vmem:[%s1565 + $0x30] sm:$0xff]
  %v1573 = vld [vmem:[%s1565 + $0x38] sm:$0xff]
  %v1574 = vld [vmem:[%s1565 + $0x40] sm:$0xff]
  %v1575 = vld [vmem:[%s1565 + $0x48] sm:$0xff]
  %v1577 = vsel %vm1169, %v1561, 0
  %v1580 = vsel %vm1169, %v1562, 0
  %v1583 = vsel %vm1169, %v1563, 0
  %v1586 = vsel %vm1169, %v1564, 0
  %1588 = vmatprep.subr.mxu0 0.0
  %1589 = vmatpush1.msra.mxu0 0.0
  %1590 = vmatprep.subr.mxu0 0.0
  %1591 = vmatpush1.msra.mxu0 0.0
  %1592 = vmatprep.subr.mxu0 0.0
  %1593 = vmatpush1.msra.mxu0 0.0
  %1594 = vmatprep.subr.mxu0 0.0
  %1595 = vmatpush1.msra.mxu0 0.0
  %1596 = vmatprep.subr.mxu0 0.0
  %1597 = vmatpush1.msra.mxu0 0.0
  %1598 = vmatprep.subr.mxu0 0.0
  %1599 = vmatpush1.msra.mxu0 0.0
  %1600 = vmatprep.subr.mxu0 0.0
  %1601 = vmatpush1.msra.mxu0 %v1575
  %1602 = vmatprep.subr.mxu0 0.0
  %1603 = vmatpush1.msra.mxu0 %v1574
  %1604 = vmatprep.subr.mxu0 0.0
  %1605 = vmatpush1.msra.mxu0 %v1573
  %1606 = vmatprep.subr.mxu0 0.0
  %1607 = vmatpush1.msra.mxu0 %v1572
  %1608 = vmatprep.subr.mxu0 0.0
  %1609 = vmatpush1.msra.mxu0 %v1571
  %1610 = vmatprep.subr.mxu0 0.0
  %1611 = vmatpush1.msra.mxu0 %v1570
  %1612 = vmatprep.subr.mxu0 0.0
  %1613 = vmatpush1.msra.mxu0 %v1569
  %1614 = vmatprep.subr.mxu0 0.0
  %1615 = vmatpush1.msra.mxu0 %v1568
  %1616 = vmatprep.subr.mxu0 0.0
  %1617 = vmatpush1.msra.mxu0 %v1567
  %1618 = vmatprep.subr.mxu0 0.0
  %1619 = vmatpush1.msra.mxu0 %v1566
  %1620 = vmatprep.subr.mxu0 0.0
  %1621 = vmatpush2.msra.mxu0 0.0
  %1622 = vmatprep.subr.mxu0 0.0
  %1623 = vmatpush2.msra.mxu0 0.0
  %1624 = vmatprep.subr.mxu0 0.0
  %1625 = vmatpush2.msra.mxu0 0.0
  %1626 = vmatprep.subr.mxu0 0.0
  %1627 = vmatpush2.msra.mxu0 0.0
  %1628 = vmatprep.subr.mxu0 0.0
  %1629 = vmatpush2.msra.mxu0 0.0
  %1630 = vmatprep.subr.mxu0 0.0
  %1631 = vmatpush2.msra.mxu0 0.0
  %1632 = vmatprep.subr.mxu0 0.0
  %1633 = vmatpush2.msra.mxu0 0.0
  %1634 = vmatprep.subr.mxu0 0.0
  %1635 = vmatpush2.msra.mxu0 0.0
  %1636 = vmatprep.subr.mxu0 0.0
  %1637 = vmatpush2.msra.mxu0 0.0
  %1638 = vmatprep.subr.mxu0 0.0
  %1639 = vmatpush2.msra.mxu0 0.0
  %1640 = vmatprep.subr.mxu0 0.0
  %1641 = vmatpush2.msra.mxu0 0.0
  %1642 = vmatprep.subr.mxu0 0.0
  %1643 = vmatpush2.msra.mxu0 0.0
  %1644 = vmatprep.subr.mxu0 0.0
  %1645 = vmatpush2.msra.mxu0 0.0
  %1646 = vmatprep.subr.mxu0 0.0
  %1647 = vmatpush2.msra.mxu0 0.0
  %1648 = vmatprep.subr.mxu0 0.0
  %1649 = vmatpush2.msra.mxu0 0.0
  %1650 = vmatprep.subr.mxu0 0.0
  %1651 = vmatpush2.msra.mxu0 0.0
  %1652 = vmatprep.mubr.f32.mxu0 0.0
  %1653 = vmatmul.mubr.f32.gmra.mxu0 %v1577
  %v1654 = vpop.f32.mrf.mxu0
  %v1655 = vadd.f32 0.0, %v1654
  %v1656 = vpop.f32.mrf.mxu0
  %1657 = vmatprep.mubr.f32.mxu0 0.0
  %1658 = vmatmul.mubr.f32.gmra.mxu0 %v1580
  %v1659 = vpop.f32.mrf.mxu0
  %v1660 = vadd.f32 0.0, %v1659
  %v1661 = vpop.f32.mrf.mxu0
  %1662 = vmatprep.mubr.f32.mxu0 0.0
  %1663 = vmatmul.mubr.f32.gmra.mxu0 %v1583
  %v1664 = vpop.f32.mrf.mxu0
  %v1665 = vadd.f32 0.0, %v1664
  %v1666 = vpop.f32.mrf.mxu0
  %1667 = vmatprep.mubr.f32.mxu0 0.0
  %1668 = vmatmul.mubr.f32.gmra.mxu0 %v1586
  %v1669 = vpop.f32.mrf.mxu0
  %v1670 = vadd.f32 0.0, %v1669
  %v1671 = vpop.f32.mrf.mxu0
  %1672 = vdwg.mxu0
  %v1673 = vadd.f32 %v1557, %v1655
  %v1674 = vadd.f32 %v1558, %v1660
  %v1675 = vadd.f32 %v1559, %v1665
  %v1676 = vadd.f32 %v1560, %v1670
  %v1677 = vld [vmem:[#allocation2 + $0x3] sm:$0xff]
  %v1678 = vld [vmem:[#allocation2 + $0xb] sm:$0xff]
  %v1679 = vld [vmem:[#allocation2 + $0x1b] sm:$0xff]
  %v1680 = vld [vmem:[#allocation2 + $0x23] sm:$0xff]
  %s1681 = scalar_lea.vmem %s4, 240
  %v1682 = vld [vmem:[%s1681] sm:$0xff]
  %v1683 = vld [vmem:[%s1681 + $0x8] sm:$0xff]
  %v1684 = vld [vmem:[%s1681 + $0x10] sm:$0xff]
  %v1685 = vld [vmem:[%s1681 + $0x18] sm:$0xff]
  %v1686 = vld [vmem:[%s1681 + $0x20] sm:$0xff]
  %v1687 = vld [vmem:[%s1681 + $0x28] sm:$0xff]
  %v1688 = vld [vmem:[%s1681 + $0x30] sm:$0xff]
  %v1689 = vld [vmem:[%s1681 + $0x38] sm:$0xff]
  %v1690 = vld [vmem:[%s1681 + $0x40] sm:$0xff]
  %v1691 = vld [vmem:[%s1681 + $0x48] sm:$0xff]
  %v1693 = vsel %vm1169, %v1677, 0
  %v1696 = vsel %vm1169, %v1678, 0
  %v1699 = vsel %vm1169, %v1679, 0
  %v1702 = vsel %vm1169, %v1680, 0
  %1704 = vmatprep.subr.mxu0 0.0
  %1705 = vmatpush1.msra.mxu0 0.0
  %1706 = vmatprep.subr.mxu0 0.0
  %1707 = vmatpush1.msra.mxu0 0.0
  %1708 = vmatprep.subr.mxu0 0.0
  %1709 = vmatpush1.msra.mxu0 0.0
  %1710 = vmatprep.subr.mxu0 0.0
  %1711 = vmatpush1.msra.mxu0 0.0
  %1712 = vmatprep.subr.mxu0 0.0
  %1713 = vmatpush1.msra.mxu0 0.0
  %1714 = vmatprep.subr.mxu0 0.0
  %1715 = vmatpush1.msra.mxu0 0.0
  %1716 = vmatprep.subr.mxu0 0.0
  %1717 = vmatpush1.msra.mxu0 %v1691
  %1718 = vmatprep.subr.mxu0 0.0
  %1719 = vmatpush1.msra.mxu0 %v1690
  %1720 = vmatprep.subr.mxu0 0.0
  %1721 = vmatpush1.msra.mxu0 %v1689
  %1722 = vmatprep.subr.mxu0 0.0
  %1723 = vmatpush1.msra.mxu0 %v1688
  %1724 = vmatprep.subr.mxu0 0.0
  %1725 = vmatpush1.msra.mxu0 %v1687
  %1726 = vmatprep.subr.mxu0 0.0
  %1727 = vmatpush1.msra.mxu0 %v1686
  %1728 = vmatprep.subr.mxu0 0.0
  %1729 = vmatpush1.msra.mxu0 %v1685
  %1730 = vmatprep.subr.mxu0 0.0
  %1731 = vmatpush1.msra.mxu0 %v1684
  %1732 = vmatprep.subr.mxu0 0.0
  %1733 = vmatpush1.msra.mxu0 %v1683
  %1734 = vmatprep.subr.mxu0 0.0
  %1735 = vmatpush1.msra.mxu0 %v1682
  %1736 = vmatprep.subr.mxu0 0.0
  %1737 = vmatpush2.msra.mxu0 0.0
  %1738 = vmatprep.subr.mxu0 0.0
  %1739 = vmatpush2.msra.mxu0 0.0
  %1740 = vmatprep.subr.mxu0 0.0
  %1741 = vmatpush2.msra.mxu0 0.0
  %1742 = vmatprep.subr.mxu0 0.0
  %1743 = vmatpush2.msra.mxu0 0.0
  %1744 = vmatprep.subr.mxu0 0.0
  %1745 = vmatpush2.msra.mxu0 0.0
  %1746 = vmatprep.subr.mxu0 0.0
  %1747 = vmatpush2.msra.mxu0 0.0
  %1748 = vmatprep.subr.mxu0 0.0
  %1749 = vmatpush2.msra.mxu0 0.0
  %1750 = vmatprep.subr.mxu0 0.0
  %1751 = vmatpush2.msra.mxu0 0.0
  %1752 = vmatprep.subr.mxu0 0.0
  %1753 = vmatpush2.msra.mxu0 0.0
  %1754 = vmatprep.subr.mxu0 0.0
  %1755 = vmatpush2.msra.mxu0 0.0
  %1756 = vmatprep.subr.mxu0 0.0
  %1757 = vmatpush2.msra.mxu0 0.0
  %1758 = vmatprep.subr.mxu0 0.0
  %1759 = vmatpush2.msra.mxu0 0.0
  %1760 = vmatprep.subr.mxu0 0.0
  %1761 = vmatpush2.msra.mxu0 0.0
  %1762 = vmatprep.subr.mxu0 0.0
  %1763 = vmatpush2.msra.mxu0 0.0
  %1764 = vmatprep.subr.mxu0 0.0
  %1765 = vmatpush2.msra.mxu0 0.0
  %1766 = vmatprep.subr.mxu0 0.0
  %1767 = vmatpush2.msra.mxu0 0.0
  %1768 = vmatprep.mubr.f32.mxu0 0.0
  %1769 = vmatmul.mubr.f32.gmra.mxu0 %v1693
  %v1770 = vpop.f32.mrf.mxu0
  %v1771 = vadd.f32 0.0, %v1770
  %v1772 = vpop.f32.mrf.mxu0
  %1773 = vmatprep.mubr.f32.mxu0 0.0
  %1774 = vmatmul.mubr.f32.gmra.mxu0 %v1696
  %v1775 = vpop.f32.mrf.mxu0
  %v1776 = vadd.f32 0.0, %v1775
  %v1777 = vpop.f32.mrf.mxu0
  %1778 = vmatprep.mubr.f32.mxu0 0.0
  %1779 = vmatmul.mubr.f32.gmra.mxu0 %v1699
  %v1780 = vpop.f32.mrf.mxu0
  %v1781 = vadd.f32 0.0, %v1780
  %v1782 = vpop.f32.mrf.mxu0
  %1783 = vmatprep.mubr.f32.mxu0 0.0
  %1784 = vmatmul.mubr.f32.gmra.mxu0 %v1702
  %v1785 = vpop.f32.mrf.mxu0
  %v1786 = vadd.f32 0.0, %v1785
  %v1787 = vpop.f32.mrf.mxu0
  %1788 = vdwg.mxu0
  %v1789 = vadd.f32 %v1673, %v1771
  %v1790 = vadd.f32 %v1674, %v1776
  %v1791 = vadd.f32 %v1675, %v1781
  %v1792 = vadd.f32 %v1676, %v1786
  %v1793 = vld [vmem:[#allocation2 + $0x4] sm:$0xff]
  %v1794 = vld [vmem:[#allocation2 + $0xc] sm:$0xff]
  %v1795 = vld [vmem:[#allocation2 + $0x1c] sm:$0xff]
  %v1796 = vld [vmem:[#allocation2 + $0x24] sm:$0xff]
  %s1797 = scalar_lea.vmem %s4, 320
  %v1798 = vld [vmem:[%s1797] sm:$0xff]
  %v1799 = vld [vmem:[%s1797 + $0x8] sm:$0xff]
  %v1800 = vld [vmem:[%s1797 + $0x10] sm:$0xff]
  %v1801 = vld [vmem:[%s1797 + $0x18] sm:$0xff]
  %v1802 = vld [vmem:[%s1797 + $0x20] sm:$0xff]
  %v1803 = vld [vmem:[%s1797 + $0x28] sm:$0xff]
  %v1804 = vld [vmem:[%s1797 + $0x30] sm:$0xff]
  %v1805 = vld [vmem:[%s1797 + $0x38] sm:$0xff]
  %v1806 = vld [vmem:[%s1797 + $0x40] sm:$0xff]
  %v1807 = vld [vmem:[%s1797 + $0x48] sm:$0xff]
  %v1809 = vsel %vm1169, %v1793, 0
  %v1812 = vsel %vm1169, %v1794, 0
  %v1815 = vsel %vm1169, %v1795, 0
  %v1818 = vsel %vm1169, %v1796, 0
  %1820 = vmatprep.subr.mxu0 0.0
  %1821 = vmatpush1.msra.mxu0 0.0
  %1822 = vmatprep.subr.mxu0 0.0
  %1823 = vmatpush1.msra.mxu0 0.0
  %1824 = vmatprep.subr.mxu0 0.0
  %1825 = vmatpush1.msra.mxu0 0.0
  %1826 = vmatprep.subr.mxu0 0.0
  %1827 = vmatpush1.msra.mxu0 0.0
  %1828 = vmatprep.subr.mxu0 0.0
  %1829 = vmatpush1.msra.mxu0 0.0
  %1830 = vmatprep.subr.mxu0 0.0
  %1831 = vmatpush1.msra.mxu0 0.0
  %1832 = vmatprep.subr.mxu0 0.0
  %1833 = vmatpush1.msra.mxu0 %v1807
  %1834 = vmatprep.subr.mxu0 0.0
  %1835 = vmatpush1.msra.mxu0 %v1806
  %1836 = vmatprep.subr.mxu0 0.0
  %1837 = vmatpush1.msra.mxu0 %v1805
  %1838 = vmatprep.subr.mxu0 0.0
  %1839 = vmatpush1.msra.mxu0 %v1804
  %1840 = vmatprep.subr.mxu0 0.0
  %1841 = vmatpush1.msra.mxu0 %v1803
  %1842 = vmatprep.subr.mxu0 0.0
  %1843 = vmatpush1.msra.mxu0 %v1802
  %1844 = vmatprep.subr.mxu0 0.0
  %1845 = vmatpush1.msra.mxu0 %v1801
  %1846 = vmatprep.subr.mxu0 0.0
  %1847 = vmatpush1.msra.mxu0 %v1800
  %1848 = vmatprep.subr.mxu0 0.0
  %1849 = vmatpush1.msra.mxu0 %v1799
  %1850 = vmatprep.subr.mxu0 0.0
  %1851 = vmatpush1.msra.mxu0 %v1798
  %1852 = vmatprep.subr.mxu0 0.0
  %1853 = vmatpush2.msra.mxu0 0.0
  %1854 = vmatprep.subr.mxu0 0.0
  %1855 = vmatpush2.msra.mxu0 0.0
  %1856 = vmatprep.subr.mxu0 0.0
  %1857 = vmatpush2.msra.mxu0 0.0
  %1858 = vmatprep.subr.mxu0 0.0
  %1859 = vmatpush2.msra.mxu0 0.0
  %1860 = vmatprep.subr.mxu0 0.0
  %1861 = vmatpush2.msra.mxu0 0.0
  %1862 = vmatprep.subr.mxu0 0.0
  %1863 = vmatpush2.msra.mxu0 0.0
  %1864 = vmatprep.subr.mxu0 0.0
  %1865 = vmatpush2.msra.mxu0 0.0
  %1866 = vmatprep.subr.mxu0 0.0
  %1867 = vmatpush2.msra.mxu0 0.0
  %1868 = vmatprep.subr.mxu0 0.0
  %1869 = vmatpush2.msra.mxu0 0.0
  %1870 = vmatprep.subr.mxu0 0.0
  %1871 = vmatpush2.msra.mxu0 0.0
  %1872 = vmatprep.subr.mxu0 0.0
  %1873 = vmatpush2.msra.mxu0 0.0
  %1874 = vmatprep.subr.mxu0 0.0
  %1875 = vmatpush2.msra.mxu0 0.0
  %1876 = vmatprep.subr.mxu0 0.0
  %1877 = vmatpush2.msra.mxu0 0.0
  %1878 = vmatprep.subr.mxu0 0.0
  %1879 = vmatpush2.msra.mxu0 0.0
  %1880 = vmatprep.subr.mxu0 0.0
  %1881 = vmatpush2.msra.mxu0 0.0
  %1882 = vmatprep.subr.mxu0 0.0
  %1883 = vmatpush2.msra.mxu0 0.0
  %1884 = vmatprep.mubr.f32.mxu0 0.0
  %1885 = vmatmul.mubr.f32.gmra.mxu0 %v1809
  %v1886 = vpop.f32.mrf.mxu0
  %v1887 = vadd.f32 0.0, %v1886
  %v1888 = vpop.f32.mrf.mxu0
  %1889 = vmatprep.mubr.f32.mxu0 0.0
  %1890 = vmatmul.mubr.f32.gmra.mxu0 %v1812
  %v1891 = vpop.f32.mrf.mxu0
  %v1892 = vadd.f32 0.0, %v1891
  %v1893 = vpop.f32.mrf.mxu0
  %1894 = vmatprep.mubr.f32.mxu0 0.0
  %1895 = vmatmul.mubr.f32.gmra.mxu0 %v1815
  %v1896 = vpop.f32.mrf.mxu0
  %v1897 = vadd.f32 0.0, %v1896
  %v1898 = vpop.f32.mrf.mxu0
  %1899 = vmatprep.mubr.f32.mxu0 0.0
  %1900 = vmatmul.mubr.f32.gmra.mxu0 %v1818
  %v1901 = vpop.f32.mrf.mxu0
  %v1902 = vadd.f32 0.0, %v1901
  %v1903 = vpop.f32.mrf.mxu0
  %1904 = vdwg.mxu0
  %v1905 = vadd.f32 %v1789, %v1887
  %v1906 = vadd.f32 %v1790, %v1892
  %v1907 = vadd.f32 %v1791, %v1897
  %v1908 = vadd.f32 %v1792, %v1902
  %v1909 = vmax.f32 %v1905, 0.0
  %v1910 = vmax.f32 %v1906, 0.0
  %v1911 = vmax.f32 %v1907, 0.0
  %v1912 = vmax.f32 %v1908, 0.0
  %1913 = vst [vmem:[%s7] sm:$0xff] %v1909
  %1914 = vst [vmem:[%s7 + $0x8] sm:$0xff] %v1910
  %1915 = vst [vmem:[%s7 + $0x10] sm:$0xff] %v1911
  %1916 = vst [vmem:[%s7 + $0x18] sm:$0xff] %v1912
  // Predicated region
  $region30: #{double_blaze_block_v2.1} parent=0 // pred_check
    _
  $region31: #{double_blaze_block_v2.1} parent=0 // pred_check_branch
    %1918 = sbr.rel (0) target = $region33
  $region32: #{double_blaze_block_v2.1} parent=0 // pred_region
    _
  $region33: #{double_blaze_block_v2.1} parent=0 // pred_fallthru
    _
  // Predicated region
  $region34: #{double_blaze_block_v2.1} parent=0 // pred_check
    _
  $region35: #{double_blaze_block_v2.1} parent=0 // pred_check_branch
    %1920 = sbr.rel (0) target = $region37
  $region36: #{double_blaze_block_v2.1} parent=0 // pred_region
    _
  $region37: #{double_blaze_block_v2.1} parent=0 // pred_fallthru
    _

</llo_original>
